<compile_context>
chip_gen: v5e
topology: v5e:2x2
jax: 0.10.0
libtpu: 0.0.40
codegen_flags: <defaults>
</compile_context>

<pallas_src>
import functools
import math

import jax
import jax.numpy as jnp
from jax.experimental import pallas as pl
from jax.experimental.pallas import tpu as pltpu


def spatial_attention_kernel(w_ref, x_ref, o_ref, pad_ref, *, K, H, W, Wpad):
    # w_ref  : (2*K*K,) f32 SMEM      -- flattened conv weight (OIHW, O=1, I=2)
    # x_ref  : (B, C, H*W) VMEM       -- lane-dense input batch block
    # o_ref  : (B, 1, H*W) VMEM       -- lane-dense output batch block
    # pad_ref: (2, B, H+2p, Wpad) f32 -- zero-padded [avg; max] maps,
    #                                    Wpad = roundup(W + 2p, 128)
    B, C, HW = x_ref.shape
    p = K // 2
    Hp = H + 2 * p

    # ---------- streamed channel mean / max (bounded vreg pressure) ----------
    s = jnp.zeros((B, HW), jnp.float32)
    m = jnp.full((B, HW), -jnp.inf, jnp.float32)

    n_chunks = C // 8
    if n_chunks > 0:
        def chunk_body(i, carry):
            cs, cm = carry
            c0 = pl.multiple_of(i * 8, 8)                       # aligned sublane start
            xc = x_ref[:, pl.ds(c0, 8), :].astype(jnp.float32)  # (B, 8, HW) dense chunk
            return cs + jnp.sum(xc, axis=1), jnp.maximum(cm, jnp.max(xc, axis=1))

        s, m = jax.lax.fori_loop(0, n_chunks, chunk_body, (s, m), unroll=2)

    # Static epilogue for the C % 8 tail (and the whole reduction when C < 8,
    # e.g. the small test shapes below).  Per-channel upcast, never whole-block.
    for c in range(n_chunks * 8, C):
        xc = x_ref[:, c, :].astype(jnp.float32)                 # (B, HW)
        s = s + xc
        m = jnp.maximum(m, xc)

    avg = (s * jnp.float32(1.0 / C)).reshape(B, H, W)           # tiny relayout, O(1) in C
    mx = m.reshape(B, H, W)

    # ---------- zero-padded 2-channel map in scratch (halo-only zeroing) -----
    # Interior is fully rewritten every step, so only the p-wide halo needs
    # zeroing.  Safe under "parallel" megacore sharding (scratch is per-core).
    pad_ref[:, :, :p, :] = jnp.zeros((2, B, p, Wpad), jnp.float32)            # top rows
    pad_ref[:, :, p + H:, :] = jnp.zeros((2, B, p, Wpad), jnp.float32)        # bottom rows
    pad_ref[:, :, p:p + H, :p] = jnp.zeros((2, B, H, p), jnp.float32)         # left cols
    pad_ref[:, :, p:p + H, p + W:] = jnp.zeros((2, B, H, Wpad - (p + W)),
                                               jnp.float32)                   # right cols + tail
    pad_ref[0, :, p:p + H, p:p + W] = avg
    pad_ref[1, :, p:p + H, p:p + W] = mx

    # ---------- K x K conv (2 -> 1 ch, "same", no bias) on the VPU -----------
    # One band load per (c, kh); the K horizontal taps come from incremental
    # lane rolls (XLU) of the band instead of per-term VMEM slices.  We
    # accumulate at the padded lane width and slice once at the end; since
    # j + kw < W + 2p <= Wpad for all output lanes j < W, the circular
    # wrap-around never contaminates the valid region.
    acc = jnp.zeros((B, H, Wpad), jnp.float32)
    for c in range(2):
        for kh in range(K):
            cur = pad_ref[c, :, kh:kh + H, :]                   # (B, H, Wpad), one load
            for kw in range(K):
                acc = acc + w_ref[c * K * K + kh * K + kw] * cur
                if kw + 1 < K:
                    cur = pltpu.roll(cur, Wpad - 1, 2)          # lane shift by -1 (vrot)

    # Lane-dense sigmoid + store (reshape (B,H,W) -> (B,1,H*W) once).
    y = acc[:, :, :W].reshape(B, 1, HW)
    o_ref[...] = jax.nn.sigmoid(y).astype(o_ref.dtype)


def _pick_batch_block(N, HW, per_image_bytes, budget_bytes):
    """Batch block sized by VMEM budget, capped so (a) the 8-channel chunk and
    the running accumulators stay register-resident and (b) the grid has >= 2
    steps so the 'parallel' batch axis can be sharded across v7x TensorCores."""
    b = max(1, int(budget_bytes // max(per_image_bytes, 1)))
    b = min(b, max(1, 4096 // max(HW, 1)) if HW > 0 else 1)     # vreg working-set cap
    b = min(b, N)
    if N >= 2:
        b = min(b, N // 2)
    return max(1, b)


def spatial_attention(x, w, kernel_size=7):
    """x: (N, C, H, W); w: (1, 2, K, K) OIHW, no bias.  Returns (N, 1, H, W)."""
    assert kernel_size in (3, 7), "kernel size must be 3 or 7"
    N, C, H, W = x.shape
    K = kernel_size
    p = K // 2
    HW = H * W
    Hp = H + 2 * p
    Wpad = -(-(W + 2 * p) // 128) * 128                 # lane-aligned padded width

    w_flat = w.reshape(-1).astype(jnp.float32)          # (2*K*K,)
    x_flat = x.reshape(N, C, HW)                        # free for contiguous NCHW

    in_item = jnp.dtype(x.dtype).itemsize

    # Generation-aware VMEM budgeting (double-buffered in/out blocks + scratch).
    try:
        vmem_cap = int(pltpu.get_tpu_info().vmem_capacity_bytes)
    except Exception:
        vmem_cap = 64 * 1024 * 1024                     # conservative (v7x per-TC)
    budget = min(vmem_cap * 3 // 8, 48 * 1024 * 1024)   # ~24 MiB on v7x, 48 MiB on v5e/v6e
    per_image = 2 * (C * HW * in_item + HW * in_item) + 2 * Hp * Wpad * 4
    B_blk = _pick_batch_block(N, HW, per_image, budget)
    grid = (pl.cdiv(N, B_blk),)
    vmem_limit = int(min(vmem_cap * 3 // 4, budget + (16 << 20)))

    cost = pl.CostEstimate(
        flops=N * HW * (2 * C + 4 * K * K),
        transcendentals=N * HW,                         # sigmoid
        bytes_accessed=(N * C * HW + N * HW) * in_item + w_flat.size * 4,
    )

    kernel = functools.partial(spatial_attention_kernel, K=K, H=H, W=W, Wpad=Wpad)
    out = pl.pallas_call(
        kernel,
        out_shape=jax.ShapeDtypeStruct((N, 1, HW), x.dtype),
        grid_spec=pltpu.PrefetchScalarGridSpec(
            num_scalar_prefetch=0,
            grid=grid,
            in_specs=[
                pl.BlockSpec(memory_space=pltpu.MemorySpace.SMEM),        # conv weights
                pl.BlockSpec((B_blk, C, HW), lambda n: (n, 0, 0)),        # x batch block
            ],
            out_specs=pl.BlockSpec((B_blk, 1, HW), lambda n: (n, 0, 0)),  # lane-dense out
            scratch_shapes=[pltpu.VMEM((2, B_blk, Hp, Wpad), jnp.float32)],
        ),
        compiler_params=pltpu.CompilerParams(
            dimension_semantics=("parallel",),          # disjoint per-step outputs
            vmem_limit_bytes=vmem_limit,
        ),
        cost_estimate=cost,
    )(w_flat, x_flat)
    return out.reshape(N, 1, H, W)


def ref_spatial_attention(x, w, kernel_size=7):
    """Pure-JAX reference matching the PyTorch forward."""
    p = kernel_size // 2
    avg = jnp.mean(x, axis=1, keepdims=True)
    mx = jnp.max(x, axis=1, keepdims=True)
    feat = jnp.concatenate([avg, mx], axis=1)
    y = jax.lax.conv_general_dilated(
        feat, w, window_strides=(1, 1), padding=[(p, p), (p, p)],
        dimension_numbers=("NCHW", "OIHW", "NCHW"))
    return jax.nn.sigmoid(y)


if __name__ == "__main__":
    key = jax.random.PRNGKey(0)
    kx, kw7, kw3 = jax.random.split(key, 3)

    N, C, H, W = 2, 4, 16, 16
    x = jax.random.normal(kx, (N, C, H, W), dtype=jnp.float32)

    for K, kk in ((7, kw7), (3, kw3)):
        # Deterministic init mimicking PyTorch Conv2d default (kaiming-uniform bound).
        fan_in = 2 * K * K
        bound = 1.0 / math.sqrt(fan_in)
        w = jax.random.uniform(kk, (1, 2, K, K), dtype=jnp.float32,
                               minval=-bound, maxval=bound)

        out = jax.block_until_ready(spatial_attention(x, w, kernel_size=K))
        ref = ref_spatial_attention(x, w, kernel_size=K)

        assert out.shape == (N, 1, H, W), out.shape
        err = float(jnp.max(jnp.abs(out - ref)))
        assert err < 1e-5, f"K={K}: max abs err {err}"

    print("KERNEL_OK")
</pallas_src>

<mosaic_0001>
module attributes {stable_mosaic.version = 11 : i64} {
  func.func @spatial_attention_kernel(%arg0: i32, %arg1: memref<98xf32, #tpu.memory_space<smem>>, %arg2: memref<1x4x256xf32, #tpu.memory_space<vmem>>, %arg3: memref<1x1x256xf32, #tpu.memory_space<vmem>>, %arg4: memref<2x1x22x128xf32, #tpu.memory_space<vmem>>) attributes {dimension_semantics = [#tpu.dimension_semantics<parallel>], iteration_bounds = array<i64: 2>, scalar_prefetch = 0 : i64, scratch_operands = 1 : i64, tpu.core_type = #tpu.core_type<tc>, window_params = [{transform_indices = @transform_0, window_bounds = array<i64: 98>}, {transform_indices = @transform_1, window_bounds = array<i64: 1, 4, 256>}, {transform_indices = @transform_2, window_bounds = array<i64: 1, 1, 256>}]} {
    %cst = arith.constant 0.000000e+00 : f32
    %0 = vector.broadcast %cst : f32 to vector<1x256xf32>
    %cst_0 = arith.constant 0xFF800000 : f32
    %1 = vector.broadcast %cst_0 : f32 to vector<1x256xf32>
    %c0 = arith.constant 0 : index
    %c0_1 = arith.constant 0 : index
    %c0_2 = arith.constant 0 : index
    %2 = vector.load %arg2[%c0, %c0_1, %c0_2] : memref<1x4x256xf32, #tpu.memory_space<vmem>>, vector<1x1x256xf32>
    %3 = vector.shape_cast %2 : vector<1x1x256xf32> to vector<1x256xf32>
    %4 = arith.addf %0, %3 : vector<1x256xf32>
    %5 = arith.maximumf %1, %3 : vector<1x256xf32>
    %c0_3 = arith.constant 0 : index
    %c1 = arith.constant 1 : index
    %c0_4 = arith.constant 0 : index
    %6 = vector.load %arg2[%c0_3, %c1, %c0_4] : memref<1x4x256xf32, #tpu.memory_space<vmem>>, vector<1x1x256xf32>
    %7 = vector.shape_cast %6 : vector<1x1x256xf32> to vector<1x256xf32>
    %8 = arith.addf %4, %7 : vector<1x256xf32>
    %9 = arith.maximumf %5, %7 : vector<1x256xf32>
    %c0_5 = arith.constant 0 : index
    %c2 = arith.constant 2 : index
    %c0_6 = arith.constant 0 : index
    %10 = vector.load %arg2[%c0_5, %c2, %c0_6] : memref<1x4x256xf32, #tpu.memory_space<vmem>>, vector<1x1x256xf32>
    %11 = vector.shape_cast %10 : vector<1x1x256xf32> to vector<1x256xf32>
    %12 = arith.addf %8, %11 : vector<1x256xf32>
    %13 = arith.maximumf %9, %11 : vector<1x256xf32>
    %c0_7 = arith.constant 0 : index
    %c3 = arith.constant 3 : index
    %c0_8 = arith.constant 0 : index
    %14 = vector.load %arg2[%c0_7, %c3, %c0_8] : memref<1x4x256xf32, #tpu.memory_space<vmem>>, vector<1x1x256xf32>
    %15 = vector.shape_cast %14 : vector<1x1x256xf32> to vector<1x256xf32>
    %16 = arith.addf %12, %15 : vector<1x256xf32>
    %17 = arith.maximumf %13, %15 : vector<1x256xf32>
    %cst_9 = arith.constant 2.500000e-01 : f32
    %18 = vector.broadcast %cst_9 : f32 to vector<1x256xf32>
    %19 = arith.mulf %16, %18 : vector<1x256xf32>
    %20 = vector.shape_cast %19 : vector<1x256xf32> to vector<1x16x16xf32>
    %21 = vector.shape_cast %17 : vector<1x256xf32> to vector<1x16x16xf32>
    %cst_10 = arith.constant 0.000000e+00 : f32
    %22 = vector.broadcast %cst_10 : f32 to vector<2x1x3x128xf32>
    %c0_11 = arith.constant 0 : index
    %c0_12 = arith.constant 0 : index
    %c0_13 = arith.constant 0 : index
    %c0_14 = arith.constant 0 : index
    %23 = vector.load %arg4[%c0_11, %c0_12, %c0_13, %c0_14] : memref<2x1x22x128xf32, #tpu.memory_space<vmem>>, vector<2x1x3x128xf32>
    tpu.vector_store %arg4[%c0_11, %c0_12, %c0_13, %c0_14], %22 {strides = array<i32>} : memref<2x1x22x128xf32, #tpu.memory_space<vmem>>, vector<2x1x3x128xf32>,
    %cst_15 = arith.constant 0.000000e+00 : f32
    %24 = vector.broadcast %cst_15 : f32 to vector<2x1x3x128xf32>
    %c0_16 = arith.constant 0 : index
    %c0_17 = arith.constant 0 : index
    %c19 = arith.constant 19 : index
    %c0_18 = arith.constant 0 : index
    %25 = vector.load %arg4[%c0_16, %c0_17, %c19, %c0_18] : memref<2x1x22x128xf32, #tpu.memory_space<vmem>>, vector<2x1x3x128xf32>
    tpu.vector_store %arg4[%c0_16, %c0_17, %c19, %c0_18], %24 {strides = array<i32>} : memref<2x1x22x128xf32, #tpu.memory_space<vmem>>, vector<2x1x3x128xf32>,
    %cst_19 = arith.constant 0.000000e+00 : f32
    %26 = vector.broadcast %cst_19 : f32 to vector<2x1x16x3xf32>
    %c0_20 = arith.constant 0 : index
    %c0_21 = arith.constant 0 : index
    %c3_22 = arith.constant 3 : index
    %c0_23 = arith.constant 0 : index
    %27 = vector.load %arg4[%c0_20, %c0_21, %c3_22, %c0_23] : memref<2x1x22x128xf32, #tpu.memory_space<vmem>>, vector<2x1x16x3xf32>
    tpu.vector_store %arg4[%c0_20, %c0_21, %c3_22, %c0_23], %26 {strides = array<i32>} : memref<2x1x22x128xf32, #tpu.memory_space<vmem>>, vector<2x1x16x3xf32>,
    %cst_24 = arith.constant 0.000000e+00 : f32
    %28 = vector.broadcast %cst_24 : f32 to vector<2x1x16x109xf32>
    %c0_25 = arith.constant 0 : index
    %c0_26 = arith.constant 0 : index
    %c3_27 = arith.constant 3 : index
    %c19_28 = arith.constant 19 : index
    %29 = vector.load %arg4[%c0_25, %c0_26, %c3_27, %c19_28] : memref<2x1x22x128xf32, #tpu.memory_space<vmem>>, vector<2x1x16x109xf32>
    tpu.vector_store %arg4[%c0_25, %c0_26, %c3_27, %c19_28], %28 {strides = array<i32>} : memref<2x1x22x128xf32, #tpu.memory_space<vmem>>, vector<2x1x16x109xf32>,
    %c0_29 = arith.constant 0 : index
    %c0_30 = arith.constant 0 : index
    %c3_31 = arith.constant 3 : index
    %c3_32 = arith.constant 3 : index
    %30 = vector.load %arg4[%c0_29, %c0_30, %c3_31, %c3_32] : memref<2x1x22x128xf32, #tpu.memory_space<vmem>>, vector<1x1x16x16xf32>
    %31 = vector.shape_cast %30 : vector<1x1x16x16xf32> to vector<1x16x16xf32>
    %32 = vector.shape_cast %20 : vector<1x16x16xf32> to vector<1x1x16x16xf32>
    tpu.vector_store %arg4[%c0_29, %c0_30, %c3_31, %c3_32], %32 {strides = array<i32>} : memref<2x1x22x128xf32, #tpu.memory_space<vmem>>, vector<1x1x16x16xf32>,
    %c1_33 = arith.constant 1 : index
    %c0_34 = arith.constant 0 : index
    %c3_35 = arith.constant 3 : index
    %c3_36 = arith.constant 3 : index
    %33 = vector.load %arg4[%c1_33, %c0_34, %c3_35, %c3_36] : memref<2x1x22x128xf32, #tpu.memory_space<vmem>>, vector<1x1x16x16xf32>
    %34 = vector.shape_cast %33 : vector<1x1x16x16xf32> to vector<1x16x16xf32>
    %35 = vector.shape_cast %21 : vector<1x16x16xf32> to vector<1x1x16x16xf32>
    tpu.vector_store %arg4[%c1_33, %c0_34, %c3_35, %c3_36], %35 {strides = array<i32>} : memref<2x1x22x128xf32, #tpu.memory_space<vmem>>, vector<1x1x16x16xf32>,
    %cst_37 = arith.constant 0.000000e+00 : f32
    %36 = vector.broadcast %cst_37 : f32 to vector<1x16x128xf32>
    %c0_38 = arith.constant 0 : index
    %c0_39 = arith.constant 0 : index
    %c0_40 = arith.constant 0 : index
    %c0_41 = arith.constant 0 : index
    %37 = vector.load %arg4[%c0_38, %c0_39, %c0_40, %c0_41] : memref<2x1x22x128xf32, #tpu.memory_space<vmem>>, vector<1x1x16x128xf32>
    %38 = vector.shape_cast %37 : vector<1x1x16x128xf32> to vector<1x16x128xf32>
    %c0_42 = arith.constant 0 : index
    %39 = memref.load %arg1[%c0_42] : memref<98xf32, #tpu.memory_space<smem>>
    %40 = vector.broadcast %39 : f32 to vector<1x16x128xf32>
    %41 = arith.mulf %40, %38 : vector<1x16x128xf32>
    %42 = arith.addf %36, %41 : vector<1x16x128xf32>
    %c127_i32 = arith.constant 127 : i32
    %43 = tpu.dynamic_rotate %38 by %c127_i32 dim 2 : vector<1x16x128xf32>, i32 -> vector<1x16x128xf32>
    %c1_43 = arith.constant 1 : index
    %44 = memref.load %arg1[%c1_43] : memref<98xf32, #tpu.memory_space<smem>>
    %45 = vector.broadcast %44 : f32 to vector<1x16x128xf32>
    %46 = arith.mulf %45, %43 : vector<1x16x128xf32>
    %47 = arith.addf %42, %46 : vector<1x16x128xf32>
    %c127_i32_44 = arith.constant 127 : i32
    %48 = tpu.dynamic_rotate %43 by %c127_i32_44 dim 2 : vector<1x16x128xf32>, i32 -> vector<1x16x128xf32>
    %c2_45 = arith.constant 2 : index
    %49 = memref.load %arg1[%c2_45] : memref<98xf32, #tpu.memory_space<smem>>
    %50 = vector.broadcast %49 : f32 to vector<1x16x128xf32>
    %51 = arith.mulf %50, %48 : vector<1x16x128xf32>
    %52 = arith.addf %47, %51 : vector<1x16x128xf32>
    %c127_i32_46 = arith.constant 127 : i32
    %53 = tpu.dynamic_rotate %48 by %c127_i32_46 dim 2 : vector<1x16x128xf32>, i32 -> vector<1x16x128xf32>
    %c3_47 = arith.constant 3 : index
    %54 = memref.load %arg1[%c3_47] : memref<98xf32, #tpu.memory_space<smem>>
    %55 = vector.broadcast %54 : f32 to vector<1x16x128xf32>
    %56 = arith.mulf %55, %53 : vector<1x16x128xf32>
    %57 = arith.addf %52, %56 : vector<1x16x128xf32>
    %c127_i32_48 = arith.constant 127 : i32
    %58 = tpu.dynamic_rotate %53 by %c127_i32_48 dim 2 : vector<1x16x128xf32>, i32 -> vector<1x16x128xf32>
    %c4 = arith.constant 4 : index
    %59 = memref.load %arg1[%c4] : memref<98xf32, #tpu.memory_space<smem>>
    %60 = vector.broadcast %59 : f32 to vector<1x16x128xf32>
    %61 = arith.mulf %60, %58 : vector<1x16x128xf32>
    %62 = arith.addf %57, %61 : vector<1x16x128xf32>
    %c127_i32_49 = arith.constant 127 : i32
    %63 = tpu.dynamic_rotate %58 by %c127_i32_49 dim 2 : vector<1x16x128xf32>, i32 -> vector<1x16x128xf32>
    %c5 = arith.constant 5 : index
    %64 = memref.load %arg1[%c5] : memref<98xf32, #tpu.memory_space<smem>>
    %65 = vector.broadcast %64 : f32 to vector<1x16x128xf32>
    %66 = arith.mulf %65, %63 : vector<1x16x128xf32>
    %67 = arith.addf %62, %66 : vector<1x16x128xf32>
    %c127_i32_50 = arith.constant 127 : i32
    %68 = tpu.dynamic_rotate %63 by %c127_i32_50 dim 2 : vector<1x16x128xf32>, i32 -> vector<1x16x128xf32>
    %c6 = arith.constant 6 : index
    %69 = memref.load %arg1[%c6] : memref<98xf32, #tpu.memory_space<smem>>
    %70 = vector.broadcast %69 : f32 to vector<1x16x128xf32>
    %71 = arith.mulf %70, %68 : vector<1x16x128xf32>
    %72 = arith.addf %67, %71 : vector<1x16x128xf32>
    %c0_51 = arith.constant 0 : index
    %c0_52 = arith.constant 0 : index
    %c1_53 = arith.constant 1 : index
    %c0_54 = arith.constant 0 : index
    %73 = vector.load %arg4[%c0_51, %c0_52, %c1_53, %c0_54] : memref<2x1x22x128xf32, #tpu.memory_space<vmem>>, vector<1x1x16x128xf32>
    %74 = vector.shape_cast %73 : vector<1x1x16x128xf32> to vector<1x16x128xf32>
    %c7 = arith.constant 7 : index
    %75 = memref.load %arg1[%c7] : memref<98xf32, #tpu.memory_space<smem>>
    %76 = vector.broadcast %75 : f32 to vector<1x16x128xf32>
    %77 = arith.mulf %76, %74 : vector<1x16x128xf32>
    %78 = arith.addf %72, %77 : vector<1x16x128xf32>
    %c127_i32_55 = arith.constant 127 : i32
    %79 = tpu.dynamic_rotate %74 by %c127_i32_55 dim 2 : vector<1x16x128xf32>, i32 -> vector<1x16x128xf32>
    %c8 = arith.constant 8 : index
    %80 = memref.load %arg1[%c8] : memref<98xf32, #tpu.memory_space<smem>>
    %81 = vector.broadcast %80 : f32 to vector<1x16x128xf32>
    %82 = arith.mulf %81, %79 : vector<1x16x128xf32>
    %83 = arith.addf %78, %82 : vector<1x16x128xf32>
    %c127_i32_56 = arith.constant 127 : i32
    %84 = tpu.dynamic_rotate %79 by %c127_i32_56 dim 2 : vector<1x16x128xf32>, i32 -> vector<1x16x128xf32>
    %c9 = arith.constant 9 : index
    %85 = memref.load %arg1[%c9] : memref<98xf32, #tpu.memory_space<smem>>
    %86 = vector.broadcast %85 : f32 to vector<1x16x128xf32>
    %87 = arith.mulf %86, %84 : vector<1x16x128xf32>
    %88 = arith.addf %83, %87 : vector<1x16x128xf32>
    %c127_i32_57 = arith.constant 127 : i32
    %89 = tpu.dynamic_rotate %84 by %c127_i32_57 dim 2 : vector<1x16x128xf32>, i32 -> vector<1x16x128xf32>
    %c10 = arith.constant 10 : index
    %90 = memref.load %arg1[%c10] : memref<98xf32, #tpu.memory_space<smem>>
    %91 = vector.broadcast %90 : f32 to vector<1x16x128xf32>
    %92 = arith.mulf %91, %89 : vector<1x16x128xf32>
    %93 = arith.addf %88, %92 : vector<1x16x128xf32>
    %c127_i32_58 = arith.constant 127 : i32
    %94 = tpu.dynamic_rotate %89 by %c127_i32_58 dim 2 : vector<1x16x128xf32>, i32 -> vector<1x16x128xf32>
    %c11 = arith.constant 11 : index
    %95 = memref.load %arg1[%c11] : memref<98xf32, #tpu.memory_space<smem>>
    %96 = vector.broadcast %95 : f32 to vector<1x16x128xf32>
    %97 = arith.mulf %96, %94 : vector<1x16x128xf32>
    %98 = arith.addf %93, %97 : vector<1x16x128xf32>
    %c127_i32_59 = arith.constant 127 : i32
    %99 = tpu.dynamic_rotate %94 by %c127_i32_59 dim 2 : vector<1x16x128xf32>, i32 -> vector<1x16x128xf32>
    %c12 = arith.constant 12 : index
    %100 = memref.load %arg1[%c12] : memref<98xf32, #tpu.memory_space<smem>>
    %101 = vector.broadcast %100 : f32 to vector<1x16x128xf32>
    %102 = arith.mulf %101, %99 : vector<1x16x128xf32>
    %103 = arith.addf %98, %102 : vector<1x16x128xf32>
    %c127_i32_60 = arith.constant 127 : i32
    %104 = tpu.dynamic_rotate %99 by %c127_i32_60 dim 2 : vector<1x16x128xf32>, i32 -> vector<1x16x128xf32>
    %c13 = arith.constant 13 : index
    %105 = memref.load %arg1[%c13] : memref<98xf32, #tpu.memory_space<smem>>
    %106 = vector.broadcast %105 : f32 to vector<1x16x128xf32>
    %107 = arith.mulf %106, %104 : vector<1x16x128xf32>
    %108 = arith.addf %103, %107 : vector<1x16x128xf32>
    %c0_61 = arith.constant 0 : index
    %c0_62 = arith.constant 0 : index
    %c2_63 = arith.constant 2 : index
    %c0_64 = arith.constant 0 : index
    %109 = vector.load %arg4[%c0_61, %c0_62, %c2_63, %c0_64] : memref<2x1x22x128xf32, #tpu.memory_space<vmem>>, vector<1x1x16x128xf32>
    %110 = vector.shape_cast %109 : vector<1x1x16x128xf32> to vector<1x16x128xf32>
    %c14 = arith.constant 14 : index
    %111 = memref.load %arg1[%c14] : memref<98xf32, #tpu.memory_space<smem>>
    %112 = vector.broadcast %111 : f32 to vector<1x16x128xf32>
    %113 = arith.mulf %112, %110 : vector<1x16x128xf32>
    %114 = arith.addf %108, %113 : vector<1x16x128xf32>
    %c127_i32_65 = arith.constant 127 : i32
    %115 = tpu.dynamic_rotate %110 by %c127_i32_65 dim 2 : vector<1x16x128xf32>, i32 -> vector<1x16x128xf32>
    %c15 = arith.constant 15 : index
    %116 = memref.load %arg1[%c15] : memref<98xf32, #tpu.memory_space<smem>>
    %117 = vector.broadcast %116 : f32 to vector<1x16x128xf32>
    %118 = arith.mulf %117, %115 : vector<1x16x128xf32>
    %119 = arith.addf %114, %118 : vector<1x16x128xf32>
    %c127_i32_66 = arith.constant 127 : i32
    %120 = tpu.dynamic_rotate %115 by %c127_i32_66 dim 2 : vector<1x16x128xf32>, i32 -> vector<1x16x128xf32>
    %c16 = arith.constant 16 : index
    %121 = memref.load %arg1[%c16] : memref<98xf32, #tpu.memory_space<smem>>
    %122 = vector.broadcast %121 : f32 to vector<1x16x128xf32>
    %123 = arith.mulf %122, %120 : vector<1x16x128xf32>
    %124 = arith.addf %119, %123 : vector<1x16x128xf32>
    %c127_i32_67 = arith.constant 127 : i32
    %125 = tpu.dynamic_rotate %120 by %c127_i32_67 dim 2 : vector<1x16x128xf32>, i32 -> vector<1x16x128xf32>
    %c17 = arith.constant 17 : index
    %126 = memref.load %arg1[%c17] : memref<98xf32, #tpu.memory_space<smem>>
    %127 = vector.broadcast %126 : f32 to vector<1x16x128xf32>
    %128 = arith.mulf %127, %125 : vector<1x16x128xf32>
    %129 = arith.addf %124, %128 : vector<1x16x128xf32>
    %c127_i32_68 = arith.constant 127 : i32
    %130 = tpu.dynamic_rotate %125 by %c127_i32_68 dim 2 : vector<1x16x128xf32>, i32 -> vector<1x16x128xf32>
    %c18 = arith.constant 18 : index
    %131 = memref.load %arg1[%c18] : memref<98xf32, #tpu.memory_space<smem>>
    %132 = vector.broadcast %131 : f32 to vector<1x16x128xf32>
    %133 = arith.mulf %132, %130 : vector<1x16x128xf32>
    %134 = arith.addf %129, %133 : vector<1x16x128xf32>
    %c127_i32_69 = arith.constant 127 : i32
    %135 = tpu.dynamic_rotate %130 by %c127_i32_69 dim 2 : vector<1x16x128xf32>, i32 -> vector<1x16x128xf32>
    %c19_70 = arith.constant 19 : index
    %136 = memref.load %arg1[%c19_70] : memref<98xf32, #tpu.memory_space<smem>>
    %137 = vector.broadcast %136 : f32 to vector<1x16x128xf32>
    %138 = arith.mulf %137, %135 : vector<1x16x128xf32>
    %139 = arith.addf %134, %138 : vector<1x16x128xf32>
    %c127_i32_71 = arith.constant 127 : i32
    %140 = tpu.dynamic_rotate %135 by %c127_i32_71 dim 2 : vector<1x16x128xf32>, i32 -> vector<1x16x128xf32>
    %c20 = arith.constant 20 : index
    %141 = memref.load %arg1[%c20] : memref<98xf32, #tpu.memory_space<smem>>
    %142 = vector.broadcast %141 : f32 to vector<1x16x128xf32>
    %143 = arith.mulf %142, %140 : vector<1x16x128xf32>
    %144 = arith.addf %139, %143 : vector<1x16x128xf32>
    %c0_72 = arith.constant 0 : index
    %c0_73 = arith.constant 0 : index
    %c3_74 = arith.constant 3 : index
    %c0_75 = arith.constant 0 : index
    %145 = vector.load %arg4[%c0_72, %c0_73, %c3_74, %c0_75] : memref<2x1x22x128xf32, #tpu.memory_space<vmem>>, vector<1x1x16x128xf32>
    %146 = vector.shape_cast %145 : vector<1x1x16x128xf32> to vector<1x16x128xf32>
    %c21 = arith.constant 21 : index
    %147 = memref.load %arg1[%c21] : memref<98xf32, #tpu.memory_space<smem>>
    %148 = vector.broadcast %147 : f32 to vector<1x16x128xf32>
    %149 = arith.mulf %148, %146 : vector<1x16x128xf32>
    %150 = arith.addf %144, %149 : vector<1x16x128xf32>
    %c127_i32_76 = arith.constant 127 : i32
    %151 = tpu.dynamic_rotate %146 by %c127_i32_76 dim 2 : vector<1x16x128xf32>, i32 -> vector<1x16x128xf32>
    %c22 = arith.constant 22 : index
    %152 = memref.load %arg1[%c22] : memref<98xf32, #tpu.memory_space<smem>>
    %153 = vector.broadcast %152 : f32 to vector<1x16x128xf32>
    %154 = arith.mulf %153, %151 : vector<1x16x128xf32>
    %155 = arith.addf %150, %154 : vector<1x16x128xf32>
    %c127_i32_77 = arith.constant 127 : i32
    %156 = tpu.dynamic_rotate %151 by %c127_i32_77 dim 2 : vector<1x16x128xf32>, i32 -> vector<1x16x128xf32>
    %c23 = arith.constant 23 : index
    %157 = memref.load %arg1[%c23] : memref<98xf32, #tpu.memory_space<smem>>
    %158 = vector.broadcast %157 : f32 to vector<1x16x128xf32>
    %159 = arith.mulf %158, %156 : vector<1x16x128xf32>
    %160 = arith.addf %155, %159 : vector<1x16x128xf32>
    %c127_i32_78 = arith.constant 127 : i32
    %161 = tpu.dynamic_rotate %156 by %c127_i32_78 dim 2 : vector<1x16x128xf32>, i32 -> vector<1x16x128xf32>
    %c24 = arith.constant 24 : index
    %162 = memref.load %arg1[%c24] : memref<98xf32, #tpu.memory_space<smem>>
    %163 = vector.broadcast %162 : f32 to vector<1x16x128xf32>
    %164 = arith.mulf %163, %161 : vector<1x16x128xf32>
    %165 = arith.addf %160, %164 : vector<1x16x128xf32>
    %c127_i32_79 = arith.constant 127 : i32
    %166 = tpu.dynamic_rotate %161 by %c127_i32_79 dim 2 : vector<1x16x128xf32>, i32 -> vector<1x16x128xf32>
    %c25 = arith.constant 25 : index
    %167 = memref.load %arg1[%c25] : memref<98xf32, #tpu.memory_space<smem>>
    %168 = vector.broadcast %167 : f32 to vector<1x16x128xf32>
    %169 = arith.mulf %168, %166 : vector<1x16x128xf32>
    %170 = arith.addf %165, %169 : vector<1x16x128xf32>
    %c127_i32_80 = arith.constant 127 : i32
    %171 = tpu.dynamic_rotate %166 by %c127_i32_80 dim 2 : vector<1x16x128xf32>, i32 -> vector<1x16x128xf32>
    %c26 = arith.constant 26 : index
    %172 = memref.load %arg1[%c26] : memref<98xf32, #tpu.memory_space<smem>>
    %173 = vector.broadcast %172 : f32 to vector<1x16x128xf32>
    %174 = arith.mulf %173, %171 : vector<1x16x128xf32>
    %175 = arith.addf %170, %174 : vector<1x16x128xf32>
    %c127_i32_81 = arith.constant 127 : i32
    %176 = tpu.dynamic_rotate %171 by %c127_i32_81 dim 2 : vector<1x16x128xf32>, i32 -> vector<1x16x128xf32>
    %c27 = arith.constant 27 : index
    %177 = memref.load %arg1[%c27] : memref<98xf32, #tpu.memory_space<smem>>
    %178 = vector.broadcast %177 : f32 to vector<1x16x128xf32>
    %179 = arith.mulf %178, %176 : vector<1x16x128xf32>
    %180 = arith.addf %175, %179 : vector<1x16x128xf32>
    %c0_82 = arith.constant 0 : index
    %c0_83 = arith.constant 0 : index
    %c4_84 = arith.constant 4 : index
    %c0_85 = arith.constant 0 : index
    %181 = vector.load %arg4[%c0_82, %c0_83, %c4_84, %c0_85] : memref<2x1x22x128xf32, #tpu.memory_space<vmem>>, vector<1x1x16x128xf32>
    %182 = vector.shape_cast %181 : vector<1x1x16x128xf32> to vector<1x16x128xf32>
    %c28 = arith.constant 28 : index
    %183 = memref.load %arg1[%c28] : memref<98xf32, #tpu.memory_space<smem>>
    %184 = vector.broadcast %183 : f32 to vector<1x16x128xf32>
    %185 = arith.mulf %184, %182 : vector<1x16x128xf32>
    %186 = arith.addf %180, %185 : vector<1x16x128xf32>
    %c127_i32_86 = arith.constant 127 : i32
    %187 = tpu.dynamic_rotate %182 by %c127_i32_86 dim 2 : vector<1x16x128xf32>, i32 -> vector<1x16x128xf32>
    %c29 = arith.constant 29 : index
    %188 = memref.load %arg1[%c29] : memref<98xf32, #tpu.memory_space<smem>>
    %189 = vector.broadcast %188 : f32 to vector<1x16x128xf32>
    %190 = arith.mulf %189, %187 : vector<1x16x128xf32>
    %191 = arith.addf %186, %190 : vector<1x16x128xf32>
    %c127_i32_87 = arith.constant 127 : i32
    %192 = tpu.dynamic_rotate %187 by %c127_i32_87 dim 2 : vector<1x16x128xf32>, i32 -> vector<1x16x128xf32>
    %c30 = arith.constant 30 : index
    %193 = memref.load %arg1[%c30] : memref<98xf32, #tpu.memory_space<smem>>
    %194 = vector.broadcast %193 : f32 to vector<1x16x128xf32>
    %195 = arith.mulf %194, %192 : vector<1x16x128xf32>
    %196 = arith.addf %191, %195 : vector<1x16x128xf32>
    %c127_i32_88 = arith.constant 127 : i32
    %197 = tpu.dynamic_rotate %192 by %c127_i32_88 dim 2 : vector<1x16x128xf32>, i32 -> vector<1x16x128xf32>
    %c31 = arith.constant 31 : index
    %198 = memref.load %arg1[%c31] : memref<98xf32, #tpu.memory_space<smem>>
    %199 = vector.broadcast %198 : f32 to vector<1x16x128xf32>
    %200 = arith.mulf %199, %197 : vector<1x16x128xf32>
    %201 = arith.addf %196, %200 : vector<1x16x128xf32>
    %c127_i32_89 = arith.constant 127 : i32
    %202 = tpu.dynamic_rotate %197 by %c127_i32_89 dim 2 : vector<1x16x128xf32>, i32 -> vector<1x16x128xf32>
    %c32 = arith.constant 32 : index
    %203 = memref.load %arg1[%c32] : memref<98xf32, #tpu.memory_space<smem>>
    %204 = vector.broadcast %203 : f32 to vector<1x16x128xf32>
    %205 = arith.mulf %204, %202 : vector<1x16x128xf32>
    %206 = arith.addf %201, %205 : vector<1x16x128xf32>
    %c127_i32_90 = arith.constant 127 : i32
    %207 = tpu.dynamic_rotate %202 by %c127_i32_90 dim 2 : vector<1x16x128xf32>, i32 -> vector<1x16x128xf32>
    %c33 = arith.constant 33 : index
    %208 = memref.load %arg1[%c33] : memref<98xf32, #tpu.memory_space<smem>>
    %209 = vector.broadcast %208 : f32 to vector<1x16x128xf32>
    %210 = arith.mulf %209, %207 : vector<1x16x128xf32>
    %211 = arith.addf %206, %210 : vector<1x16x128xf32>
    %c127_i32_91 = arith.constant 127 : i32
    %212 = tpu.dynamic_rotate %207 by %c127_i32_91 dim 2 : vector<1x16x128xf32>, i32 -> vector<1x16x128xf32>
    %c34 = arith.constant 34 : index
    %213 = memref.load %arg1[%c34] : memref<98xf32, #tpu.memory_space<smem>>
    %214 = vector.broadcast %213 : f32 to vector<1x16x128xf32>
    %215 = arith.mulf %214, %212 : vector<1x16x128xf32>
    %216 = arith.addf %211, %215 : vector<1x16x128xf32>
    %c0_92 = arith.constant 0 : index
    %c0_93 = arith.constant 0 : index
    %c5_94 = arith.constant 5 : index
    %c0_95 = arith.constant 0 : index
    %217 = vector.load %arg4[%c0_92, %c0_93, %c5_94, %c0_95] : memref<2x1x22x128xf32, #tpu.memory_space<vmem>>, vector<1x1x16x128xf32>
    %218 = vector.shape_cast %217 : vector<1x1x16x128xf32> to vector<1x16x128xf32>
    %c35 = arith.constant 35 : index
    %219 = memref.load %arg1[%c35] : memref<98xf32, #tpu.memory_space<smem>>
    %220 = vector.broadcast %219 : f32 to vector<1x16x128xf32>
    %221 = arith.mulf %220, %218 : vector<1x16x128xf32>
    %222 = arith.addf %216, %221 : vector<1x16x128xf32>
    %c127_i32_96 = arith.constant 127 : i32
    %223 = tpu.dynamic_rotate %218 by %c127_i32_96 dim 2 : vector<1x16x128xf32>, i32 -> vector<1x16x128xf32>
    %c36 = arith.constant 36 : index
    %224 = memref.load %arg1[%c36] : memref<98xf32, #tpu.memory_space<smem>>
    %225 = vector.broadcast %224 : f32 to vector<1x16x128xf32>
    %226 = arith.mulf %225, %223 : vector<1x16x128xf32>
    %227 = arith.addf %222, %226 : vector<1x16x128xf32>
    %c127_i32_97 = arith.constant 127 : i32
    %228 = tpu.dynamic_rotate %223 by %c127_i32_97 dim 2 : vector<1x16x128xf32>, i32 -> vector<1x16x128xf32>
    %c37 = arith.constant 37 : index
    %229 = memref.load %arg1[%c37] : memref<98xf32, #tpu.memory_space<smem>>
    %230 = vector.broadcast %229 : f32 to vector<1x16x128xf32>
    %231 = arith.mulf %230, %228 : vector<1x16x128xf32>
    %232 = arith.addf %227, %231 : vector<1x16x128xf32>
    %c127_i32_98 = arith.constant 127 : i32
    %233 = tpu.dynamic_rotate %228 by %c127_i32_98 dim 2 : vector<1x16x128xf32>, i32 -> vector<1x16x128xf32>
    %c38 = arith.constant 38 : index
    %234 = memref.load %arg1[%c38] : memref<98xf32, #tpu.memory_space<smem>>
    %235 = vector.broadcast %234 : f32 to vector<1x16x128xf32>
    %236 = arith.mulf %235, %233 : vector<1x16x128xf32>
    %237 = arith.addf %232, %236 : vector<1x16x128xf32>
    %c127_i32_99 = arith.constant 127 : i32
    %238 = tpu.dynamic_rotate %233 by %c127_i32_99 dim 2 : vector<1x16x128xf32>, i32 -> vector<1x16x128xf32>
    %c39 = arith.constant 39 : index
    %239 = memref.load %arg1[%c39] : memref<98xf32, #tpu.memory_space<smem>>
    %240 = vector.broadcast %239 : f32 to vector<1x16x128xf32>
    %241 = arith.mulf %240, %238 : vector<1x16x128xf32>
    %242 = arith.addf %237, %241 : vector<1x16x128xf32>
    %c127_i32_100 = arith.constant 127 : i32
    %243 = tpu.dynamic_rotate %238 by %c127_i32_100 dim 2 : vector<1x16x128xf32>, i32 -> vector<1x16x128xf32>
    %c40 = arith.constant 40 : index
    %244 = memref.load %arg1[%c40] : memref<98xf32, #tpu.memory_space<smem>>
    %245 = vector.broadcast %244 : f32 to vector<1x16x128xf32>
    %246 = arith.mulf %245, %243 : vector<1x16x128xf32>
    %247 = arith.addf %242, %246 : vector<1x16x128xf32>
    %c127_i32_101 = arith.constant 127 : i32
    %248 = tpu.dynamic_rotate %243 by %c127_i32_101 dim 2 : vector<1x16x128xf32>, i32 -> vector<1x16x128xf32>
    %c41 = arith.constant 41 : index
    %249 = memref.load %arg1[%c41] : memref<98xf32, #tpu.memory_space<smem>>
    %250 = vector.broadcast %249 : f32 to vector<1x16x128xf32>
    %251 = arith.mulf %250, %248 : vector<1x16x128xf32>
    %252 = arith.addf %247, %251 : vector<1x16x128xf32>
    %c0_102 = arith.constant 0 : index
    %c0_103 = arith.constant 0 : index
    %c6_104 = arith.constant 6 : index
    %c0_105 = arith.constant 0 : index
    %253 = vector.load %arg4[%c0_102, %c0_103, %c6_104, %c0_105] : memref<2x1x22x128xf32, #tpu.memory_space<vmem>>, vector<1x1x16x128xf32>
    %254 = vector.shape_cast %253 : vector<1x1x16x128xf32> to vector<1x16x128xf32>
    %c42 = arith.constant 42 : index
    %255 = memref.load %arg1[%c42] : memref<98xf32, #tpu.memory_space<smem>>
    %256 = vector.broadcast %255 : f32 to vector<1x16x128xf32>
    %257 = arith.mulf %256, %254 : vector<1x16x128xf32>
    %258 = arith.addf %252, %257 : vector<1x16x128xf32>
    %c127_i32_106 = arith.constant 127 : i32
    %259 = tpu.dynamic_rotate %254 by %c127_i32_106 dim 2 : vector<1x16x128xf32>, i32 -> vector<1x16x128xf32>
    %c43 = arith.constant 43 : index
    %260 = memref.load %arg1[%c43] : memref<98xf32, #tpu.memory_space<smem>>
    %261 = vector.broadcast %260 : f32 to vector<1x16x128xf32>
    %262 = arith.mulf %261, %259 : vector<1x16x128xf32>
    %263 = arith.addf %258, %262 : vector<1x16x128xf32>
    %c127_i32_107 = arith.constant 127 : i32
    %264 = tpu.dynamic_rotate %259 by %c127_i32_107 dim 2 : vector<1x16x128xf32>, i32 -> vector<1x16x128xf32>
    %c44 = arith.constant 44 : index
    %265 = memref.load %arg1[%c44] : memref<98xf32, #tpu.memory_space<smem>>
    %266 = vector.broadcast %265 : f32 to vector<1x16x128xf32>
    %267 = arith.mulf %266, %264 : vector<1x16x128xf32>
    %268 = arith.addf %263, %267 : vector<1x16x128xf32>
    %c127_i32_108 = arith.constant 127 : i32
    %269 = tpu.dynamic_rotate %264 by %c127_i32_108 dim 2 : vector<1x16x128xf32>, i32 -> vector<1x16x128xf32>
    %c45 = arith.constant 45 : index
    %270 = memref.load %arg1[%c45] : memref<98xf32, #tpu.memory_space<smem>>
    %271 = vector.broadcast %270 : f32 to vector<1x16x128xf32>
    %272 = arith.mulf %271, %269 : vector<1x16x128xf32>
    %273 = arith.addf %268, %272 : vector<1x16x128xf32>
    %c127_i32_109 = arith.constant 127 : i32
    %274 = tpu.dynamic_rotate %269 by %c127_i32_109 dim 2 : vector<1x16x128xf32>, i32 -> vector<1x16x128xf32>
    %c46 = arith.constant 46 : index
    %275 = memref.load %arg1[%c46] : memref<98xf32, #tpu.memory_space<smem>>
    %276 = vector.broadcast %275 : f32 to vector<1x16x128xf32>
    %277 = arith.mulf %276, %274 : vector<1x16x128xf32>
    %278 = arith.addf %273, %277 : vector<1x16x128xf32>
    %c127_i32_110 = arith.constant 127 : i32
    %279 = tpu.dynamic_rotate %274 by %c127_i32_110 dim 2 : vector<1x16x128xf32>, i32 -> vector<1x16x128xf32>
    %c47 = arith.constant 47 : index
    %280 = memref.load %arg1[%c47] : memref<98xf32, #tpu.memory_space<smem>>
    %281 = vector.broadcast %280 : f32 to vector<1x16x128xf32>
    %282 = arith.mulf %281, %279 : vector<1x16x128xf32>
    %283 = arith.addf %278, %282 : vector<1x16x128xf32>
    %c127_i32_111 = arith.constant 127 : i32
    %284 = tpu.dynamic_rotate %279 by %c127_i32_111 dim 2 : vector<1x16x128xf32>, i32 -> vector<1x16x128xf32>
    %c48 = arith.constant 48 : index
    %285 = memref.load %arg1[%c48] : memref<98xf32, #tpu.memory_space<smem>>
    %286 = vector.broadcast %285 : f32 to vector<1x16x128xf32>
    %287 = arith.mulf %286, %284 : vector<1x16x128xf32>
    %288 = arith.addf %283, %287 : vector<1x16x128xf32>
    %c1_112 = arith.constant 1 : index
    %c0_113 = arith.constant 0 : index
    %c0_114 = arith.constant 0 : index
    %c0_115 = arith.constant 0 : index
    %289 = vector.load %arg4[%c1_112, %c0_113, %c0_114, %c0_115] : memref<2x1x22x128xf32, #tpu.memory_space<vmem>>, vector<1x1x16x128xf32>
    %290 = vector.shape_cast %289 : vector<1x1x16x128xf32> to vector<1x16x128xf32>
    %c49 = arith.constant 49 : index
    %291 = memref.load %arg1[%c49] : memref<98xf32, #tpu.memory_space<smem>>
    %292 = vector.broadcast %291 : f32 to vector<1x16x128xf32>
    %293 = arith.mulf %292, %290 : vector<1x16x128xf32>
    %294 = arith.addf %288, %293 : vector<1x16x128xf32>
    %c127_i32_116 = arith.constant 127 : i32
    %295 = tpu.dynamic_rotate %290 by %c127_i32_116 dim 2 : vector<1x16x128xf32>, i32 -> vector<1x16x128xf32>
    %c50 = arith.constant 50 : index
    %296 = memref.load %arg1[%c50] : memref<98xf32, #tpu.memory_space<smem>>
    %297 = vector.broadcast %296 : f32 to vector<1x16x128xf32>
    %298 = arith.mulf %297, %295 : vector<1x16x128xf32>
    %299 = arith.addf %294, %298 : vector<1x16x128xf32>
    %c127_i32_117 = arith.constant 127 : i32
    %300 = tpu.dynamic_rotate %295 by %c127_i32_117 dim 2 : vector<1x16x128xf32>, i32 -> vector<1x16x128xf32>
    %c51 = arith.constant 51 : index
    %301 = memref.load %arg1[%c51] : memref<98xf32, #tpu.memory_space<smem>>
    %302 = vector.broadcast %301 : f32 to vector<1x16x128xf32>
    %303 = arith.mulf %302, %300 : vector<1x16x128xf32>
    %304 = arith.addf %299, %303 : vector<1x16x128xf32>
    %c127_i32_118 = arith.constant 127 : i32
    %305 = tpu.dynamic_rotate %300 by %c127_i32_118 dim 2 : vector<1x16x128xf32>, i32 -> vector<1x16x128xf32>
    %c52 = arith.constant 52 : index
    %306 = memref.load %arg1[%c52] : memref<98xf32, #tpu.memory_space<smem>>
    %307 = vector.broadcast %306 : f32 to vector<1x16x128xf32>
    %308 = arith.mulf %307, %305 : vector<1x16x128xf32>
    %309 = arith.addf %304, %308 : vector<1x16x128xf32>
    %c127_i32_119 = arith.constant 127 : i32
    %310 = tpu.dynamic_rotate %305 by %c127_i32_119 dim 2 : vector<1x16x128xf32>, i32 -> vector<1x16x128xf32>
    %c53 = arith.constant 53 : index
    %311 = memref.load %arg1[%c53] : memref<98xf32, #tpu.memory_space<smem>>
    %312 = vector.broadcast %311 : f32 to vector<1x16x128xf32>
    %313 = arith.mulf %312, %310 : vector<1x16x128xf32>
    %314 = arith.addf %309, %313 : vector<1x16x128xf32>
    %c127_i32_120 = arith.constant 127 : i32
    %315 = tpu.dynamic_rotate %310 by %c127_i32_120 dim 2 : vector<1x16x128xf32>, i32 -> vector<1x16x128xf32>
    %c54 = arith.constant 54 : index
    %316 = memref.load %arg1[%c54] : memref<98xf32, #tpu.memory_space<smem>>
    %317 = vector.broadcast %316 : f32 to vector<1x16x128xf32>
    %318 = arith.mulf %317, %315 : vector<1x16x128xf32>
    %319 = arith.addf %314, %318 : vector<1x16x128xf32>
    %c127_i32_121 = arith.constant 127 : i32
    %320 = tpu.dynamic_rotate %315 by %c127_i32_121 dim 2 : vector<1x16x128xf32>, i32 -> vector<1x16x128xf32>
    %c55 = arith.constant 55 : index
    %321 = memref.load %arg1[%c55] : memref<98xf32, #tpu.memory_space<smem>>
    %322 = vector.broadcast %321 : f32 to vector<1x16x128xf32>
    %323 = arith.mulf %322, %320 : vector<1x16x128xf32>
    %324 = arith.addf %319, %323 : vector<1x16x128xf32>
    %c1_122 = arith.constant 1 : index
    %c0_123 = arith.constant 0 : index
    %c1_124 = arith.constant 1 : index
    %c0_125 = arith.constant 0 : index
    %325 = vector.load %arg4[%c1_122, %c0_123, %c1_124, %c0_125] : memref<2x1x22x128xf32, #tpu.memory_space<vmem>>, vector<1x1x16x128xf32>
    %326 = vector.shape_cast %325 : vector<1x1x16x128xf32> to vector<1x16x128xf32>
    %c56 = arith.constant 56 : index
    %327 = memref.load %arg1[%c56] : memref<98xf32, #tpu.memory_space<smem>>
    %328 = vector.broadcast %327 : f32 to vector<1x16x128xf32>
    %329 = arith.mulf %328, %326 : vector<1x16x128xf32>
    %330 = arith.addf %324, %329 : vector<1x16x128xf32>
    %c127_i32_126 = arith.constant 127 : i32
    %331 = tpu.dynamic_rotate %326 by %c127_i32_126 dim 2 : vector<1x16x128xf32>, i32 -> vector<1x16x128xf32>
    %c57 = arith.constant 57 : index
    %332 = memref.load %arg1[%c57] : memref<98xf32, #tpu.memory_space<smem>>
    %333 = vector.broadcast %332 : f32 to vector<1x16x128xf32>
    %334 = arith.mulf %333, %331 : vector<1x16x128xf32>
    %335 = arith.addf %330, %334 : vector<1x16x128xf32>
    %c127_i32_127 = arith.constant 127 : i32
    %336 = tpu.dynamic_rotate %331 by %c127_i32_127 dim 2 : vector<1x16x128xf32>, i32 -> vector<1x16x128xf32>
    %c58 = arith.constant 58 : index
    %337 = memref.load %arg1[%c58] : memref<98xf32, #tpu.memory_space<smem>>
    %338 = vector.broadcast %337 : f32 to vector<1x16x128xf32>
    %339 = arith.mulf %338, %336 : vector<1x16x128xf32>
    %340 = arith.addf %335, %339 : vector<1x16x128xf32>
    %c127_i32_128 = arith.constant 127 : i32
    %341 = tpu.dynamic_rotate %336 by %c127_i32_128 dim 2 : vector<1x16x128xf32>, i32 -> vector<1x16x128xf32>
    %c59 = arith.constant 59 : index
    %342 = memref.load %arg1[%c59] : memref<98xf32, #tpu.memory_space<smem>>
    %343 = vector.broadcast %342 : f32 to vector<1x16x128xf32>
    %344 = arith.mulf %343, %341 : vector<1x16x128xf32>
    %345 = arith.addf %340, %344 : vector<1x16x128xf32>
    %c127_i32_129 = arith.constant 127 : i32
    %346 = tpu.dynamic_rotate %341 by %c127_i32_129 dim 2 : vector<1x16x128xf32>, i32 -> vector<1x16x128xf32>
    %c60 = arith.constant 60 : index
    %347 = memref.load %arg1[%c60] : memref<98xf32, #tpu.memory_space<smem>>
    %348 = vector.broadcast %347 : f32 to vector<1x16x128xf32>
    %349 = arith.mulf %348, %346 : vector<1x16x128xf32>
    %350 = arith.addf %345, %349 : vector<1x16x128xf32>
    %c127_i32_130 = arith.constant 127 : i32
    %351 = tpu.dynamic_rotate %346 by %c127_i32_130 dim 2 : vector<1x16x128xf32>, i32 -> vector<1x16x128xf32>
    %c61 = arith.constant 61 : index
    %352 = memref.load %arg1[%c61] : memref<98xf32, #tpu.memory_space<smem>>
    %353 = vector.broadcast %352 : f32 to vector<1x16x128xf32>
    %354 = arith.mulf %353, %351 : vector<1x16x128xf32>
    %355 = arith.addf %350, %354 : vector<1x16x128xf32>
    %c127_i32_131 = arith.constant 127 : i32
    %356 = tpu.dynamic_rotate %351 by %c127_i32_131 dim 2 : vector<1x16x128xf32>, i32 -> vector<1x16x128xf32>
    %c62 = arith.constant 62 : index
    %357 = memref.load %arg1[%c62] : memref<98xf32, #tpu.memory_space<smem>>
    %358 = vector.broadcast %357 : f32 to vector<1x16x128xf32>
    %359 = arith.mulf %358, %356 : vector<1x16x128xf32>
    %360 = arith.addf %355, %359 : vector<1x16x128xf32>
    %c1_132 = arith.constant 1 : index
    %c0_133 = arith.constant 0 : index
    %c2_134 = arith.constant 2 : index
    %c0_135 = arith.constant 0 : index
    %361 = vector.load %arg4[%c1_132, %c0_133, %c2_134, %c0_135] : memref<2x1x22x128xf32, #tpu.memory_space<vmem>>, vector<1x1x16x128xf32>
    %362 = vector.shape_cast %361 : vector<1x1x16x128xf32> to vector<1x16x128xf32>
    %c63 = arith.constant 63 : index
    %363 = memref.load %arg1[%c63] : memref<98xf32, #tpu.memory_space<smem>>
    %364 = vector.broadcast %363 : f32 to vector<1x16x128xf32>
    %365 = arith.mulf %364, %362 : vector<1x16x128xf32>
    %366 = arith.addf %360, %365 : vector<1x16x128xf32>
    %c127_i32_136 = arith.constant 127 : i32
    %367 = tpu.dynamic_rotate %362 by %c127_i32_136 dim 2 : vector<1x16x128xf32>, i32 -> vector<1x16x128xf32>
    %c64 = arith.constant 64 : index
    %368 = memref.load %arg1[%c64] : memref<98xf32, #tpu.memory_space<smem>>
    %369 = vector.broadcast %368 : f32 to vector<1x16x128xf32>
    %370 = arith.mulf %369, %367 : vector<1x16x128xf32>
    %371 = arith.addf %366, %370 : vector<1x16x128xf32>
    %c127_i32_137 = arith.constant 127 : i32
    %372 = tpu.dynamic_rotate %367 by %c127_i32_137 dim 2 : vector<1x16x128xf32>, i32 -> vector<1x16x128xf32>
    %c65 = arith.constant 65 : index
    %373 = memref.load %arg1[%c65] : memref<98xf32, #tpu.memory_space<smem>>
    %374 = vector.broadcast %373 : f32 to vector<1x16x128xf32>
    %375 = arith.mulf %374, %372 : vector<1x16x128xf32>
    %376 = arith.addf %371, %375 : vector<1x16x128xf32>
    %c127_i32_138 = arith.constant 127 : i32
    %377 = tpu.dynamic_rotate %372 by %c127_i32_138 dim 2 : vector<1x16x128xf32>, i32 -> vector<1x16x128xf32>
    %c66 = arith.constant 66 : index
    %378 = memref.load %arg1[%c66] : memref<98xf32, #tpu.memory_space<smem>>
    %379 = vector.broadcast %378 : f32 to vector<1x16x128xf32>
    %380 = arith.mulf %379, %377 : vector<1x16x128xf32>
    %381 = arith.addf %376, %380 : vector<1x16x128xf32>
    %c127_i32_139 = arith.constant 127 : i32
    %382 = tpu.dynamic_rotate %377 by %c127_i32_139 dim 2 : vector<1x16x128xf32>, i32 -> vector<1x16x128xf32>
    %c67 = arith.constant 67 : index
    %383 = memref.load %arg1[%c67] : memref<98xf32, #tpu.memory_space<smem>>
    %384 = vector.broadcast %383 : f32 to vector<1x16x128xf32>
    %385 = arith.mulf %384, %382 : vector<1x16x128xf32>
    %386 = arith.addf %381, %385 : vector<1x16x128xf32>
    %c127_i32_140 = arith.constant 127 : i32
    %387 = tpu.dynamic_rotate %382 by %c127_i32_140 dim 2 : vector<1x16x128xf32>, i32 -> vector<1x16x128xf32>
    %c68 = arith.constant 68 : index
    %388 = memref.load %arg1[%c68] : memref<98xf32, #tpu.memory_space<smem>>
    %389 = vector.broadcast %388 : f32 to vector<1x16x128xf32>
    %390 = arith.mulf %389, %387 : vector<1x16x128xf32>
    %391 = arith.addf %386, %390 : vector<1x16x128xf32>
    %c127_i32_141 = arith.constant 127 : i32
    %392 = tpu.dynamic_rotate %387 by %c127_i32_141 dim 2 : vector<1x16x128xf32>, i32 -> vector<1x16x128xf32>
    %c69 = arith.constant 69 : index
    %393 = memref.load %arg1[%c69] : memref<98xf32, #tpu.memory_space<smem>>
    %394 = vector.broadcast %393 : f32 to vector<1x16x128xf32>
    %395 = arith.mulf %394, %392 : vector<1x16x128xf32>
    %396 = arith.addf %391, %395 : vector<1x16x128xf32>
    %c1_142 = arith.constant 1 : index
    %c0_143 = arith.constant 0 : index
    %c3_144 = arith.constant 3 : index
    %c0_145 = arith.constant 0 : index
    %397 = vector.load %arg4[%c1_142, %c0_143, %c3_144, %c0_145] : memref<2x1x22x128xf32, #tpu.memory_space<vmem>>, vector<1x1x16x128xf32>
    %398 = vector.shape_cast %397 : vector<1x1x16x128xf32> to vector<1x16x128xf32>
    %c70 = arith.constant 70 : index
    %399 = memref.load %arg1[%c70] : memref<98xf32, #tpu.memory_space<smem>>
    %400 = vector.broadcast %399 : f32 to vector<1x16x128xf32>
    %401 = arith.mulf %400, %398 : vector<1x16x128xf32>
    %402 = arith.addf %396, %401 : vector<1x16x128xf32>
    %c127_i32_146 = arith.constant 127 : i32
    %403 = tpu.dynamic_rotate %398 by %c127_i32_146 dim 2 : vector<1x16x128xf32>, i32 -> vector<1x16x128xf32>
    %c71 = arith.constant 71 : index
    %404 = memref.load %arg1[%c71] : memref<98xf32, #tpu.memory_space<smem>>
    %405 = vector.broadcast %404 : f32 to vector<1x16x128xf32>
    %406 = arith.mulf %405, %403 : vector<1x16x128xf32>
    %407 = arith.addf %402, %406 : vector<1x16x128xf32>
    %c127_i32_147 = arith.constant 127 : i32
    %408 = tpu.dynamic_rotate %403 by %c127_i32_147 dim 2 : vector<1x16x128xf32>, i32 -> vector<1x16x128xf32>
    %c72 = arith.constant 72 : index
    %409 = memref.load %arg1[%c72] : memref<98xf32, #tpu.memory_space<smem>>
    %410 = vector.broadcast %409 : f32 to vector<1x16x128xf32>
    %411 = arith.mulf %410, %408 : vector<1x16x128xf32>
    %412 = arith.addf %407, %411 : vector<1x16x128xf32>
    %c127_i32_148 = arith.constant 127 : i32
    %413 = tpu.dynamic_rotate %408 by %c127_i32_148 dim 2 : vector<1x16x128xf32>, i32 -> vector<1x16x128xf32>
    %c73 = arith.constant 73 : index
    %414 = memref.load %arg1[%c73] : memref<98xf32, #tpu.memory_space<smem>>
    %415 = vector.broadcast %414 : f32 to vector<1x16x128xf32>
    %416 = arith.mulf %415, %413 : vector<1x16x128xf32>
    %417 = arith.addf %412, %416 : vector<1x16x128xf32>
    %c127_i32_149 = arith.constant 127 : i32
    %418 = tpu.dynamic_rotate %413 by %c127_i32_149 dim 2 : vector<1x16x128xf32>, i32 -> vector<1x16x128xf32>
    %c74 = arith.constant 74 : index
    %419 = memref.load %arg1[%c74] : memref<98xf32, #tpu.memory_space<smem>>
    %420 = vector.broadcast %419 : f32 to vector<1x16x128xf32>
    %421 = arith.mulf %420, %418 : vector<1x16x128xf32>
    %422 = arith.addf %417, %421 : vector<1x16x128xf32>
    %c127_i32_150 = arith.constant 127 : i32
    %423 = tpu.dynamic_rotate %418 by %c127_i32_150 dim 2 : vector<1x16x128xf32>, i32 -> vector<1x16x128xf32>
    %c75 = arith.constant 75 : index
    %424 = memref.load %arg1[%c75] : memref<98xf32, #tpu.memory_space<smem>>
    %425 = vector.broadcast %424 : f32 to vector<1x16x128xf32>
    %426 = arith.mulf %425, %423 : vector<1x16x128xf32>
    %427 = arith.addf %422, %426 : vector<1x16x128xf32>
    %c127_i32_151 = arith.constant 127 : i32
    %428 = tpu.dynamic_rotate %423 by %c127_i32_151 dim 2 : vector<1x16x128xf32>, i32 -> vector<1x16x128xf32>
    %c76 = arith.constant 76 : index
    %429 = memref.load %arg1[%c76] : memref<98xf32, #tpu.memory_space<smem>>
    %430 = vector.broadcast %429 : f32 to vector<1x16x128xf32>
    %431 = arith.mulf %430, %428 : vector<1x16x128xf32>
    %432 = arith.addf %427, %431 : vector<1x16x128xf32>
    %c1_152 = arith.constant 1 : index
    %c0_153 = arith.constant 0 : index
    %c4_154 = arith.constant 4 : index
    %c0_155 = arith.constant 0 : index
    %433 = vector.load %arg4[%c1_152, %c0_153, %c4_154, %c0_155] : memref<2x1x22x128xf32, #tpu.memory_space<vmem>>, vector<1x1x16x128xf32>
    %434 = vector.shape_cast %433 : vector<1x1x16x128xf32> to vector<1x16x128xf32>
    %c77 = arith.constant 77 : index
    %435 = memref.load %arg1[%c77] : memref<98xf32, #tpu.memory_space<smem>>
    %436 = vector.broadcast %435 : f32 to vector<1x16x128xf32>
    %437 = arith.mulf %436, %434 : vector<1x16x128xf32>
    %438 = arith.addf %432, %437 : vector<1x16x128xf32>
    %c127_i32_156 = arith.constant 127 : i32
    %439 = tpu.dynamic_rotate %434 by %c127_i32_156 dim 2 : vector<1x16x128xf32>, i32 -> vector<1x16x128xf32>
    %c78 = arith.constant 78 : index
    %440 = memref.load %arg1[%c78] : memref<98xf32, #tpu.memory_space<smem>>
    %441 = vector.broadcast %440 : f32 to vector<1x16x128xf32>
    %442 = arith.mulf %441, %439 : vector<1x16x128xf32>
    %443 = arith.addf %438, %442 : vector<1x16x128xf32>
    %c127_i32_157 = arith.constant 127 : i32
    %444 = tpu.dynamic_rotate %439 by %c127_i32_157 dim 2 : vector<1x16x128xf32>, i32 -> vector<1x16x128xf32>
    %c79 = arith.constant 79 : index
    %445 = memref.load %arg1[%c79] : memref<98xf32, #tpu.memory_space<smem>>
    %446 = vector.broadcast %445 : f32 to vector<1x16x128xf32>
    %447 = arith.mulf %446, %444 : vector<1x16x128xf32>
    %448 = arith.addf %443, %447 : vector<1x16x128xf32>
    %c127_i32_158 = arith.constant 127 : i32
    %449 = tpu.dynamic_rotate %444 by %c127_i32_158 dim 2 : vector<1x16x128xf32>, i32 -> vector<1x16x128xf32>
    %c80 = arith.constant 80 : index
    %450 = memref.load %arg1[%c80] : memref<98xf32, #tpu.memory_space<smem>>
    %451 = vector.broadcast %450 : f32 to vector<1x16x128xf32>
    %452 = arith.mulf %451, %449 : vector<1x16x128xf32>
    %453 = arith.addf %448, %452 : vector<1x16x128xf32>
    %c127_i32_159 = arith.constant 127 : i32
    %454 = tpu.dynamic_rotate %449 by %c127_i32_159 dim 2 : vector<1x16x128xf32>, i32 -> vector<1x16x128xf32>
    %c81 = arith.constant 81 : index
    %455 = memref.load %arg1[%c81] : memref<98xf32, #tpu.memory_space<smem>>
    %456 = vector.broadcast %455 : f32 to vector<1x16x128xf32>
    %457 = arith.mulf %456, %454 : vector<1x16x128xf32>
    %458 = arith.addf %453, %457 : vector<1x16x128xf32>
    %c127_i32_160 = arith.constant 127 : i32
    %459 = tpu.dynamic_rotate %454 by %c127_i32_160 dim 2 : vector<1x16x128xf32>, i32 -> vector<1x16x128xf32>
    %c82 = arith.constant 82 : index
    %460 = memref.load %arg1[%c82] : memref<98xf32, #tpu.memory_space<smem>>
    %461 = vector.broadcast %460 : f32 to vector<1x16x128xf32>
    %462 = arith.mulf %461, %459 : vector<1x16x128xf32>
    %463 = arith.addf %458, %462 : vector<1x16x128xf32>
    %c127_i32_161 = arith.constant 127 : i32
    %464 = tpu.dynamic_rotate %459 by %c127_i32_161 dim 2 : vector<1x16x128xf32>, i32 -> vector<1x16x128xf32>
    %c83 = arith.constant 83 : index
    %465 = memref.load %arg1[%c83] : memref<98xf32, #tpu.memory_space<smem>>
    %466 = vector.broadcast %465 : f32 to vector<1x16x128xf32>
    %467 = arith.mulf %466, %464 : vector<1x16x128xf32>
    %468 = arith.addf %463, %467 : vector<1x16x128xf32>
    %c1_162 = arith.constant 1 : index
    %c0_163 = arith.constant 0 : index
    %c5_164 = arith.constant 5 : index
    %c0_165 = arith.constant 0 : index
    %469 = vector.load %arg4[%c1_162, %c0_163, %c5_164, %c0_165] : memref<2x1x22x128xf32, #tpu.memory_space<vmem>>, vector<1x1x16x128xf32>
    %470 = vector.shape_cast %469 : vector<1x1x16x128xf32> to vector<1x16x128xf32>
    %c84 = arith.constant 84 : index
    %471 = memref.load %arg1[%c84] : memref<98xf32, #tpu.memory_space<smem>>
    %472 = vector.broadcast %471 : f32 to vector<1x16x128xf32>
    %473 = arith.mulf %472, %470 : vector<1x16x128xf32>
    %474 = arith.addf %468, %473 : vector<1x16x128xf32>
    %c127_i32_166 = arith.constant 127 : i32
    %475 = tpu.dynamic_rotate %470 by %c127_i32_166 dim 2 : vector<1x16x128xf32>, i32 -> vector<1x16x128xf32>
    %c85 = arith.constant 85 : index
    %476 = memref.load %arg1[%c85] : memref<98xf32, #tpu.memory_space<smem>>
    %477 = vector.broadcast %476 : f32 to vector<1x16x128xf32>
    %478 = arith.mulf %477, %475 : vector<1x16x128xf32>
    %479 = arith.addf %474, %478 : vector<1x16x128xf32>
    %c127_i32_167 = arith.constant 127 : i32
    %480 = tpu.dynamic_rotate %475 by %c127_i32_167 dim 2 : vector<1x16x128xf32>, i32 -> vector<1x16x128xf32>
    %c86 = arith.constant 86 : index
    %481 = memref.load %arg1[%c86] : memref<98xf32, #tpu.memory_space<smem>>
    %482 = vector.broadcast %481 : f32 to vector<1x16x128xf32>
    %483 = arith.mulf %482, %480 : vector<1x16x128xf32>
    %484 = arith.addf %479, %483 : vector<1x16x128xf32>
    %c127_i32_168 = arith.constant 127 : i32
    %485 = tpu.dynamic_rotate %480 by %c127_i32_168 dim 2 : vector<1x16x128xf32>, i32 -> vector<1x16x128xf32>
    %c87 = arith.constant 87 : index
    %486 = memref.load %arg1[%c87] : memref<98xf32, #tpu.memory_space<smem>>
    %487 = vector.broadcast %486 : f32 to vector<1x16x128xf32>
    %488 = arith.mulf %487, %485 : vector<1x16x128xf32>
    %489 = arith.addf %484, %488 : vector<1x16x128xf32>
    %c127_i32_169 = arith.constant 127 : i32
    %490 = tpu.dynamic_rotate %485 by %c127_i32_169 dim 2 : vector<1x16x128xf32>, i32 -> vector<1x16x128xf32>
    %c88 = arith.constant 88 : index
    %491 = memref.load %arg1[%c88] : memref<98xf32, #tpu.memory_space<smem>>
    %492 = vector.broadcast %491 : f32 to vector<1x16x128xf32>
    %493 = arith.mulf %492, %490 : vector<1x16x128xf32>
    %494 = arith.addf %489, %493 : vector<1x16x128xf32>
    %c127_i32_170 = arith.constant 127 : i32
    %495 = tpu.dynamic_rotate %490 by %c127_i32_170 dim 2 : vector<1x16x128xf32>, i32 -> vector<1x16x128xf32>
    %c89 = arith.constant 89 : index
    %496 = memref.load %arg1[%c89] : memref<98xf32, #tpu.memory_space<smem>>
    %497 = vector.broadcast %496 : f32 to vector<1x16x128xf32>
    %498 = arith.mulf %497, %495 : vector<1x16x128xf32>
    %499 = arith.addf %494, %498 : vector<1x16x128xf32>
    %c127_i32_171 = arith.constant 127 : i32
    %500 = tpu.dynamic_rotate %495 by %c127_i32_171 dim 2 : vector<1x16x128xf32>, i32 -> vector<1x16x128xf32>
    %c90 = arith.constant 90 : index
    %501 = memref.load %arg1[%c90] : memref<98xf32, #tpu.memory_space<smem>>
    %502 = vector.broadcast %501 : f32 to vector<1x16x128xf32>
    %503 = arith.mulf %502, %500 : vector<1x16x128xf32>
    %504 = arith.addf %499, %503 : vector<1x16x128xf32>
    %c1_172 = arith.constant 1 : index
    %c0_173 = arith.constant 0 : index
    %c6_174 = arith.constant 6 : index
    %c0_175 = arith.constant 0 : index
    %505 = vector.load %arg4[%c1_172, %c0_173, %c6_174, %c0_175] : memref<2x1x22x128xf32, #tpu.memory_space<vmem>>, vector<1x1x16x128xf32>
    %506 = vector.shape_cast %505 : vector<1x1x16x128xf32> to vector<1x16x128xf32>
    %c91 = arith.constant 91 : index
    %507 = memref.load %arg1[%c91] : memref<98xf32, #tpu.memory_space<smem>>
    %508 = vector.broadcast %507 : f32 to vector<1x16x128xf32>
    %509 = arith.mulf %508, %506 : vector<1x16x128xf32>
    %510 = arith.addf %504, %509 : vector<1x16x128xf32>
    %c127_i32_176 = arith.constant 127 : i32
    %511 = tpu.dynamic_rotate %506 by %c127_i32_176 dim 2 : vector<1x16x128xf32>, i32 -> vector<1x16x128xf32>
    %c92 = arith.constant 92 : index
    %512 = memref.load %arg1[%c92] : memref<98xf32, #tpu.memory_space<smem>>
    %513 = vector.broadcast %512 : f32 to vector<1x16x128xf32>
    %514 = arith.mulf %513, %511 : vector<1x16x128xf32>
    %515 = arith.addf %510, %514 : vector<1x16x128xf32>
    %c127_i32_177 = arith.constant 127 : i32
    %516 = tpu.dynamic_rotate %511 by %c127_i32_177 dim 2 : vector<1x16x128xf32>, i32 -> vector<1x16x128xf32>
    %c93 = arith.constant 93 : index
    %517 = memref.load %arg1[%c93] : memref<98xf32, #tpu.memory_space<smem>>
    %518 = vector.broadcast %517 : f32 to vector<1x16x128xf32>
    %519 = arith.mulf %518, %516 : vector<1x16x128xf32>
    %520 = arith.addf %515, %519 : vector<1x16x128xf32>
    %c127_i32_178 = arith.constant 127 : i32
    %521 = tpu.dynamic_rotate %516 by %c127_i32_178 dim 2 : vector<1x16x128xf32>, i32 -> vector<1x16x128xf32>
    %c94 = arith.constant 94 : index
    %522 = memref.load %arg1[%c94] : memref<98xf32, #tpu.memory_space<smem>>
    %523 = vector.broadcast %522 : f32 to vector<1x16x128xf32>
    %524 = arith.mulf %523, %521 : vector<1x16x128xf32>
    %525 = arith.addf %520, %524 : vector<1x16x128xf32>
    %c127_i32_179 = arith.constant 127 : i32
    %526 = tpu.dynamic_rotate %521 by %c127_i32_179 dim 2 : vector<1x16x128xf32>, i32 -> vector<1x16x128xf32>
    %c95 = arith.constant 95 : index
    %527 = memref.load %arg1[%c95] : memref<98xf32, #tpu.memory_space<smem>>
    %528 = vector.broadcast %527 : f32 to vector<1x16x128xf32>
    %529 = arith.mulf %528, %526 : vector<1x16x128xf32>
    %530 = arith.addf %525, %529 : vector<1x16x128xf32>
    %c127_i32_180 = arith.constant 127 : i32
    %531 = tpu.dynamic_rotate %526 by %c127_i32_180 dim 2 : vector<1x16x128xf32>, i32 -> vector<1x16x128xf32>
    %c96 = arith.constant 96 : index
    %532 = memref.load %arg1[%c96] : memref<98xf32, #tpu.memory_space<smem>>
    %533 = vector.broadcast %532 : f32 to vector<1x16x128xf32>
    %534 = arith.mulf %533, %531 : vector<1x16x128xf32>
    %535 = arith.addf %530, %534 : vector<1x16x128xf32>
    %c127_i32_181 = arith.constant 127 : i32
    %536 = tpu.dynamic_rotate %531 by %c127_i32_181 dim 2 : vector<1x16x128xf32>, i32 -> vector<1x16x128xf32>
    %c97 = arith.constant 97 : index
    %537 = memref.load %arg1[%c97] : memref<98xf32, #tpu.memory_space<smem>>
    %538 = vector.broadcast %537 : f32 to vector<1x16x128xf32>
    %539 = arith.mulf %538, %536 : vector<1x16x128xf32>
    %540 = arith.addf %535, %539 : vector<1x16x128xf32>
    %541 = vector.extract_strided_slice %540 {offsets = [0, 0, 0], sizes = [1, 16, 16], strides = [1, 1, 1]} : vector<1x16x128xf32> to vector<1x16x16xf32>
    %542 = vector.shape_cast %541 : vector<1x16x16xf32> to vector<1x1x256xf32>
    %543 = arith.negf %542 : vector<1x1x256xf32>
    %544 = math.exp %543 : vector<1x1x256xf32>
    %cst_182 = arith.constant 1.000000e+00 : f32
    %545 = vector.broadcast %cst_182 : f32 to vector<1x1x256xf32>
    %546 = arith.addf %545, %544 : vector<1x1x256xf32>
    %547 = arith.divf %545, %546 : vector<1x1x256xf32>
    %c0_183 = arith.constant 0 : index
    %c0_184 = arith.constant 0 : index
    %c0_185 = arith.constant 0 : index
    %548 = vector.load %arg3[%c0_183, %c0_184, %c0_185] : memref<1x1x256xf32, #tpu.memory_space<vmem>>, vector<1x1x256xf32>
    tpu.vector_store %arg3[%c0_183, %c0_184, %c0_185], %547 {strides = array<i32>} : memref<1x1x256xf32, #tpu.memory_space<vmem>>, vector<1x1x256xf32>,
    return
  }
  func.func @transform_0(%arg0: i32) -> i32 {
    %c0_i32 = arith.constant 0 : i32
    %c0_i32_0 = arith.constant 0 : i32
    return %c0_i32 : i32
  }
  func.func @transform_1(%arg0: i32) -> (i32, i32, i32) {
    %c0_i32 = arith.constant 0 : i32
    %c0_i32_0 = arith.constant 0 : i32
    %c0_i32_1 = arith.constant 0 : i32
    return %arg0, %c0_i32, %c0_i32_0 : i32, i32, i32
  }
  func.func @transform_2(%arg0: i32) -> (i32, i32, i32) {
    %c0_i32 = arith.constant 0 : i32
    %c0_i32_0 = arith.constant 0 : i32
    %c0_i32_1 = arith.constant 0 : i32
    return %arg0, %c0_i32, %c0_i32_0 : i32, i32, i32
  }
}

</mosaic_0001>

<llo_original>
// kernel: tpu_custom_call.1
$region0: #{tpu_custom_call.1}
  #allocation0 [shape = 'u32[]', space=smem, size = 0x4, offset = 0x4, fixed_abs, tag = 'smem constant byte address 0x4 - core index']
  #allocation1 [shape = 'u32[72,128]{1,0:T(1,128)}', space=vmem, size = 0x9000, scoped, tag = 'internal scratch']
  #allocation2 [shape = 'f32[2,1,22,128]{3,2,1,0:T(8,128)}', space=vmem, size = 0x6000, scoped, tag = 'scratch operand']
  %s0 = inlined_call_operand.hbm [shape: f32[98], index: 0, kind: input, shape index: {}]
  %s1 = inlined_call_operand.hbm [shape: f32[2,4,256], index: 1, kind: input, shape index: {}]
  %s2 = inlined_call_operand.hbm [shape: f32[2,1,256], index: 2, kind: output, shape index: {}]
  %s3 = sld [smem:[#allocation0]]
  $region49: #{tpu_custom_call.1} parent=0
    _
  %s5 = ssub.s32 1, %s3
  %s6 = scalar_select 0, %s5, %s3
  $region1: #{tpu_custom_call.1} parent=0
    #allocation3 [shape = 'u8[512]{0}', space=smem, size = 0x200, scoped, tag = 'input window, operand 0, single buffered']
    #allocation4 [shape = 's32[2]{0}', space=sflag, size = 0x8, scoped, tag = 'scoped memory for tpu_custom_call.1']
    #allocation5 [shape = 's32[2]{0}', space=sflag, size = 0x8, scoped, tag = 'scoped memory for tpu_custom_call.1']
    #allocation6 [shape = 's32[2]{0}', space=sflag, size = 0x8, scoped, tag = 'scoped memory for tpu_custom_call.1']
    #allocation7 [shape = 'u8[8192]{0}', space=vmem, size = 0x2000, scoped, tag = 'input window, operand 1']
    #allocation8 [shape = 'u8[2048]{0}', space=vmem, size = 0x800, scoped, tag = 'output window, operand 0']
    %7 = vsyncpa [#allocation6], 0
    %8 = vsyncpa [#allocation4], 0
    %s9 = scalar_lea.sflag [#allocation4], 1
    %10 = vsyncpa %s9, 0
    %11 = vsyncpa [#allocation5], 0
    %s12 = scalar_lea.sflag [#allocation5], 1
    %13 = vsyncpa %s12, 0
    loop: start=0, step=1, limit=4
    $region2: #{tpu_custom_call.1} parent=1 // loop_pre_header
      _
    $region3: #{tpu_custom_call.1} parent=1 // loop_header
      %s15 = sphi 0, %s19
      %p16 = scmp.ge.s32.totalorder %s15, 4
      %s23 = sphi 0, %s23
      %s25 = sphi 0, %s23
      %s26 = sphi 0, %s25
      %s40 = sphi 0, %s26
      %s46 = sphi 0, %s48
      %s49 = sphi 0, %s46
      %s50 = sphi 0, %s49
      %s66 = sphi 0, %s50
      %s72 = sphi 0, %s74
      %s75 = sphi 0, %s72
      %s76 = sphi 0, %s75
      %s92 = sphi 0, %s76
    $region4: #{tpu_custom_call.1} parent=1 // loop_header_branch
      %18 = sbr.rel (%p16) target = $region8
    $region5: #{tpu_custom_call.1} parent=1 // loop_body
      %s20 = ssub.s32 %s15, 1
      %s21 = ssub.s32 %s15, 2
      %s22 = sadd.s32 %s15, 1
      %s24 = sadd.s32 %s23, 1
      %p27 = scmp.eq.s32.totalorder %s15, 1
      %p28 = scmp.ne.s32.totalorder %s23, %s25
      %p29 = scmp.eq.s32.totalorder %s15, 0
      %p30 = por %p28, %p29
      %p31 = scmp.ne.s32.totalorder %s23, %s25
      %p32 = scmp.eq.s32.totalorder %s20, 1
      %p33 = por %p31, %p32
      %p34 = scmp.ne.s32.totalorder %s25, %s26
      %p35 = scmp.eq.s32.totalorder %s20, 0
      %p36 = por %p34, %p35
      %p37 = scmp.ne.s32.totalorder %s25, %s26
      %p38 = scmp.eq.s32.totalorder %s21, 1
      %p39 = por %p37, %p38
      %p41 = scmp.ne.s32.totalorder %s26, %s40
      %p42 = scmp.eq.s32.totalorder %s21, 0
      %p43 = por %p41, %p42
      %s44 = ssub.s32 %s15, %s22
      %p45 = scmp.eq.s32.totalorder %s44, 0
      %s47 = sadd.s32 %s46, 1
      %s48 = scalar_select %p45, %s46, %s47
      %p51 = pneg %p45
      %p52 = scmp.eq.s32.totalorder %s15, 1
      %p53 = por %p51, %p52
      %p54 = scmp.ne.s32.totalorder %s46, %s49
      %p55 = scmp.eq.s32.totalorder %s15, 0
      %p56 = por %p54, %p55
      %p57 = scmp.ne.s32.totalorder %s46, %s49
      %p58 = scmp.eq.s32.totalorder %s20, 1
      %p59 = por %p57, %p58
      %p60 = scmp.ne.s32.totalorder %s49, %s50
      %p61 = scmp.eq.s32.totalorder %s20, 0
      %p62 = por %p60, %p61
      %p63 = scmp.ne.s32.totalorder %s49, %s50
      %p64 = scmp.eq.s32.totalorder %s21, 1
      %p65 = por %p63, %p64
      %p67 = scmp.ne.s32.totalorder %s50, %s66
      %p68 = scmp.eq.s32.totalorder %s21, 0
      %p69 = por %p67, %p68
      %s70 = ssub.s32 %s15, %s22
      %p71 = scmp.eq.s32.totalorder %s70, 0
      %s73 = sadd.s32 %s72, 1
      %s74 = scalar_select %p71, %s72, %s73
      %p77 = pneg %p71
      %p78 = scmp.eq.s32.totalorder %s15, 1
      %p79 = por %p77, %p78
      %p80 = scmp.ne.s32.totalorder %s72, %s75
      %p81 = scmp.eq.s32.totalorder %s15, 0
      %p82 = por %p80, %p81
      %p83 = scmp.ne.s32.totalorder %s72, %s75
      %p84 = scmp.eq.s32.totalorder %s20, 1
      %p85 = por %p83, %p84
      %p86 = scmp.ne.s32.totalorder %s75, %s76
      %p87 = scmp.eq.s32.totalorder %s20, 0
      %p88 = por %p86, %p87
      %p89 = scmp.ne.s32.totalorder %s75, %s76
      %p90 = scmp.eq.s32.totalorder %s21, 1
      %p91 = por %p89, %p90
      %p93 = scmp.ne.s32.totalorder %s76, %s92
      %p94 = scmp.eq.s32.totalorder %s21, 0
      %p95 = por %p93, %p94
      %p96 = scmp.le.s32.totalorder 1, %s15
      %p97 = scmp.lt.s32.totalorder %s15, 3
      %p98 = pnand %p96, %p97
      %p99 = pneg %p98
      // Predicated region
      $region9: #{tpu_custom_call.1} parent=5 // pred_check
        _
      $region10: #{tpu_custom_call.1} parent=5 // pred_check_branch
        %101 = sbr.rel (%p98) target = $region12
      $region11: #{tpu_custom_call.1} parent=5 // pred_region
        %s102 = ssub.s32 %s15, 1
        // Predicated region
        $region13: #{tpu_custom_call.1} parent=11 // pred_check
          %p103 = pneg %p36
        $region14: #{tpu_custom_call.1} parent=11 // pred_check_branch
          %105 = sbr.rel (%p103) target = $region16
        $region15: #{tpu_custom_call.1} parent=11 // pred_region
          %107 = vsyncadd [#allocation6], 0
          %s109 = sshll.u32 %s0, 4
          %s110 = int_to_ptr.hbm [resolvable:$true] %s109
          %112 = dma.hbm_to_smem %s110, 16, [#allocation3], [#allocation6]
        $region16: #{tpu_custom_call.1} parent=11 // pred_fallthru
          _
      $region12: #{tpu_custom_call.1} parent=5 // pred_fallthru
        _
      %p113 = scmp.lt.s32.totalorder %s15, 2
      // Predicated region
      $region17: #{tpu_custom_call.1} parent=5 // pred_check
        %p114 = pneg %p113
      $region18: #{tpu_custom_call.1} parent=5 // pred_check_branch
        %116 = sbr.rel (%p114) target = $region20
      $region19: #{tpu_custom_call.1} parent=5 // pred_region
        // Predicated region
        $region21: #{tpu_custom_call.1} parent=19 // pred_check
          %p117 = pneg %p56
        $region22: #{tpu_custom_call.1} parent=19 // pred_check_branch
          %119 = sbr.rel (%p117) target = $region24
        $region23: #{tpu_custom_call.1} parent=19 // pred_region
          %s120 = sand.u32 %s46, 1
          %s121 = scalar_lea.sflag [#allocation4], %s120
          %s122 = sand.u32 %s46, 1
          %s123 = smul.addr %s122, 8
          %s124 = scalar_lea.vmem [#allocation7], %s123
          %126 = vsyncadd %s121, 0
          %s127 = smul.addr %s15, 2
          %s128 = smul.addr %s127, 4
          %s129 = scalar_lea.hbm %s1, %s128
          %s131 = sshll.u32 %s129, 4
          %s132 = int_to_ptr.hbm [resolvable:$true] %s131
          %s133 = sshll.u32 %s124, 4
          %s134 = int_to_ptr.vmem [resolvable:$true] %s133
          %136 = dma.hbm_to_vmem [thread:$0]  %s132, 128, %s134, %s121
        $region24: #{tpu_custom_call.1} parent=19 // pred_fallthru
          _
      $region20: #{tpu_custom_call.1} parent=5 // pred_fallthru
        _
      %p137 = scmp.le.s32.totalorder 1, %s15
      %p138 = scmp.lt.s32.totalorder %s15, 3
      %p139 = pnand %p137, %p138
      %p140 = pneg %p139
      // Predicated region
      $region25: #{tpu_custom_call.1} parent=5 // pred_check
        _
      $region26: #{tpu_custom_call.1} parent=5 // pred_check_branch
        %142 = sbr.rel (%p139) target = $region28
      $region27: #{tpu_custom_call.1} parent=5 // pred_region
        %s143 = ssub.s32 %s15, 1
        // Predicated region
        $region29: #{tpu_custom_call.1} parent=27 // pred_check
          %p144 = pneg %p36
        $region30: #{tpu_custom_call.1} parent=27 // pred_check_branch
          %146 = sbr.rel (%p144) target = $region32
        $region31: #{tpu_custom_call.1} parent=27 // pred_region
          %148 = dma.done [#allocation6], 16
        $region32: #{tpu_custom_call.1} parent=27 // pred_fallthru
          _
        %s149 = sand.u32 %s49, 1
        %s150 = scalar_lea.sflag [#allocation4], %s149
        %s151 = sand.u32 %s49, 1
        %s152 = smul.addr %s151, 8
        %s153 = scalar_lea.vmem [#allocation7], %s152
        // Predicated region
        $region33: #{tpu_custom_call.1} parent=27 // pred_check
          %p154 = pneg %p62
        $region34: #{tpu_custom_call.1} parent=27 // pred_check_branch
          %156 = sbr.rel (%p154) target = $region36
        $region35: #{tpu_custom_call.1} parent=27 // pred_region
          %158 = dma.done %s150, 128
        $region36: #{tpu_custom_call.1} parent=27 // pred_fallthru
          _
        %159 = sfence
        %p160 = pneg %p36
        %p161 = pneg %p33
        %s162 = sand.u32 %s49, 1
        %s163 = scalar_lea.sflag [#allocation4], %s162
        %s164 = sand.u32 %s49, 1
        %s165 = smul.addr %s164, 8
        %s166 = scalar_lea.vmem [#allocation7], %s165
        %p167 = pneg %p62
        %p168 = pneg %p59
        %p169 = pneg %p88
        %p170 = pneg %p85
        %s171 = sand.u32 %s75, 1
        %s172 = scalar_lea.sflag [#allocation5], %s171
        %s173 = sand.u32 %s75, 1
        %s174 = smul.addr %s173, 2
        %s175 = scalar_lea.vmem [#allocation8], %s174
        %v176 = vld [vmem:[%s153] ss:$4 sm:$0x3]
        %v177 = vadd.f32 %v176, 0.0
        %s178 = scalar_lea.vmem %s153, 1 [#allocation7]
        %v179 = vld [vmem:[%s178] ss:$4 sm:$0x3]
        %v180 = vadd.f32 %v177, %v179
        %v181 = vmax.f32 %v176, %v179
        %s182 = scalar_lea.vmem %s153, 2 [#allocation7]
        %v183 = vld [vmem:[%s182] ss:$4 sm:$0x3]
        %v184 = vadd.f32 %v180, %v183
        %v185 = vmax.f32 %v181, %v183
        %s186 = scalar_lea.vmem %s153, 3 [#allocation7]
        %v187 = vld [vmem:[%s186] ss:$4 sm:$0x3]
        %v188 = vadd.f32 %v184, %v187
        %v189 = vmax.f32 %v185, %v187
        %v190 = vmul.f32 %v188, 0.25
        %191 = vst [vmem:[#allocation2] sm:$0x7] 0.0
        %192 = vst [vmem:[#allocation2 + $0x18] sm:$0x7] 0.0
        %193 = vst [vmem:[#allocation2 + $0x13] sm:$0x7] 0.0
        %194 = vst [vmem:[#allocation2 + $0x2b] sm:$0x7] 0.0
        %vm195 = vcmask 23552
        %196 = vst.msk [vmem:[#allocation2 + $0x3] sm:$0xff] %vm195, 0.0
        %197 = vst.msk [vmem:[#allocation2 + $0xb] sm:$0xff] %vm195, 0.0
        %198 = vst.msk [vmem:[#allocation2 + $0x1b] sm:$0xff] %vm195, 0.0
        %199 = vst.msk [vmem:[#allocation2 + $0x23] sm:$0xff] %vm195, 0.0
        %vm200 = vcmask 1047704
        %201 = vst.msk [vmem:[#allocation2 + $0x3] sm:$0xff] %vm200, 0.0
        %202 = vst.msk [vmem:[#allocation2 + $0xb] sm:$0xff] %vm200, 0.0
        %203 = vst.msk [vmem:[#allocation2 + $0x1b] sm:$0xff] %vm200, 0.0
        %204 = vst.msk [vmem:[#allocation2 + $0x23] sm:$0xff] %vm200, 0.0
        %v206 = vrot.slane %v190, 1
        %207 = vrot.lane.b32.xlu0 %v190, 112
        %v208 = vpop.permute.xlu0 %207
        %v209 = vrot.slane %v208, 1
        %210 = vrot.lane.b32.xlu0 %v190, 96
        %v211 = vpop.permute.xlu0 %210
        %v212 = vrot.slane %v211, 1
        %213 = vrot.lane.b32.xlu0 %v190, 80
        %v214 = vpop.permute.xlu0 %213
        %v215 = vrot.slane %v214, 1
        %216 = vrot.lane.b32.xlu0 %v190, 64
        %v217 = vpop.permute.xlu0 %216
        %v218 = vrot.slane %v217, 1
        %219 = vrot.lane.b32.xlu0 %v190, 48
        %v220 = vpop.permute.xlu0 %219
        %v221 = vrot.slane %v220, 1
        %222 = vrot.lane.b32.xlu0 %v190, 32
        %v223 = vpop.permute.xlu0 %222
        %v224 = vrot.slane %v223, 1
        %225 = vrot.lane.b32.xlu0 %v190, 16
        %v226 = vpop.permute.xlu0 %225
        %v227 = vrot.slane %v226, 1
        %228 = vst [vmem:[#allocation1] ss:$9 sm:$0xff] %v190
        %s229 = scalar_lea.vmem [#allocation1], 1
        %230 = vst [vmem:[%s229] ss:$9 sm:$0xff] %v208
        %s231 = scalar_lea.vmem [#allocation1], 2
        %232 = vst [vmem:[%s231] ss:$9 sm:$0xff] %v211
        %s233 = scalar_lea.vmem [#allocation1], 3
        %234 = vst [vmem:[%s233] ss:$9 sm:$0xff] %v214
        %s235 = scalar_lea.vmem [#allocation1], 4
        %236 = vst [vmem:[%s235] ss:$9 sm:$0xff] %v217
        %s237 = scalar_lea.vmem [#allocation1], 5
        %238 = vst [vmem:[%s237] ss:$9 sm:$0xff] %v220
        %s239 = scalar_lea.vmem [#allocation1], 6
        %240 = vst [vmem:[%s239] ss:$9 sm:$0xff] %v223
        %s241 = scalar_lea.vmem [#allocation1], 7
        %242 = vst [vmem:[%s241] ss:$9 sm:$0xff] %v226
        %v243 = vld [vmem:[#allocation1] sm:$0xff]
        %244 = vst [vmem:[#allocation1] ss:$9 sm:$0xff] %v206
        %245 = vst [vmem:[%s229] ss:$9 sm:$0xff] %v209
        %246 = vst [vmem:[%s231] ss:$9 sm:$0xff] %v212
        %247 = vst [vmem:[%s233] ss:$9 sm:$0xff] %v215
        %248 = vst [vmem:[%s235] ss:$9 sm:$0xff] %v218
        %249 = vst [vmem:[%s237] ss:$9 sm:$0xff] %v221
        %250 = vst [vmem:[%s239] ss:$9 sm:$0xff] %v224
        %251 = vst [vmem:[%s241] ss:$9 sm:$0xff] %v227
        %v252 = vld [vmem:[#allocation1] sm:$0xff]
        %253 = vrot.lane.b32.xlu0 %v243, 3
        %v254 = vpop.permute.xlu0 %253
        %255 = vrot.lane.b32.xlu0 %v252, 3
        %v256 = vpop.permute.xlu0 %255
        %vm259 = vcmask 154648
        %260 = vst.msk [vmem:[#allocation2 + $0x3] sm:$0xff] %vm259, %v254
        %261 = vst.msk [vmem:[#allocation2 + $0xb] sm:$0xff] %vm259, %v256
        %v263 = vrot.slane %v189, 1
        %264 = vrot.lane.b32.xlu0 %v189, 112
        %v265 = vpop.permute.xlu0 %264
        %v266 = vrot.slane %v265, 1
        %267 = vrot.lane.b32.xlu0 %v189, 96
        %v268 = vpop.permute.xlu0 %267
        %v269 = vrot.slane %v268, 1
        %270 = vrot.lane.b32.xlu0 %v189, 80
        %v271 = vpop.permute.xlu0 %270
        %v272 = vrot.slane %v271, 1
        %273 = vrot.lane.b32.xlu0 %v189, 64
        %v274 = vpop.permute.xlu0 %273
        %v275 = vrot.slane %v274, 1
        %276 = vrot.lane.b32.xlu0 %v189, 48
        %v277 = vpop.permute.xlu0 %276
        %v278 = vrot.slane %v277, 1
        %279 = vrot.lane.b32.xlu0 %v189, 32
        %v280 = vpop.permute.xlu0 %279
        %v281 = vrot.slane %v280, 1
        %282 = vrot.lane.b32.xlu0 %v189, 16
        %v283 = vpop.permute.xlu0 %282
        %v284 = vrot.slane %v283, 1
        %285 = vst [vmem:[#allocation1] ss:$9 sm:$0xff] %v189
        %s286 = scalar_lea.vmem [#allocation1], 1
        %287 = vst [vmem:[%s286] ss:$9 sm:$0xff] %v265
        %s288 = scalar_lea.vmem [#allocation1], 2
        %289 = vst [vmem:[%s288] ss:$9 sm:$0xff] %v268
        %s290 = scalar_lea.vmem [#allocation1], 3
        %291 = vst [vmem:[%s290] ss:$9 sm:$0xff] %v271
        %s292 = scalar_lea.vmem [#allocation1], 4
        %293 = vst [vmem:[%s292] ss:$9 sm:$0xff] %v274
        %s294 = scalar_lea.vmem [#allocation1], 5
        %295 = vst [vmem:[%s294] ss:$9 sm:$0xff] %v277
        %s296 = scalar_lea.vmem [#allocation1], 6
        %297 = vst [vmem:[%s296] ss:$9 sm:$0xff] %v280
        %s298 = scalar_lea.vmem [#allocation1], 7
        %299 = vst [vmem:[%s298] ss:$9 sm:$0xff] %v283
        %v300 = vld [vmem:[#allocation1] sm:$0xff]
        %301 = vst [vmem:[#allocation1] ss:$9 sm:$0xff] %v263
        %302 = vst [vmem:[%s286] ss:$9 sm:$0xff] %v266
        %303 = vst [vmem:[%s288] ss:$9 sm:$0xff] %v269
        %304 = vst [vmem:[%s290] ss:$9 sm:$0xff] %v272
        %305 = vst [vmem:[%s292] ss:$9 sm:$0xff] %v275
        %306 = vst [vmem:[%s294] ss:$9 sm:$0xff] %v278
        %307 = vst [vmem:[%s296] ss:$9 sm:$0xff] %v281
        %308 = vst [vmem:[%s298] ss:$9 sm:$0xff] %v284
        %v309 = vld [vmem:[#allocation1] sm:$0xff]
        %310 = vrot.lane.b32.xlu0 %v300, 3
        %v311 = vpop.permute.xlu0 %310
        %312 = vrot.lane.b32.xlu0 %v309, 3
        %v313 = vpop.permute.xlu0 %312
        %s316 = scalar_lea.vmem [#allocation2], 24
        %317 = vst.msk [vmem:[%s316 + $0x3] sm:$0xff] %vm259, %v311
        %318 = vst.msk [vmem:[%s316 + $0xb] sm:$0xff] %vm259, %v313
        %v319 = vld [vmem:[#allocation2] sm:$0xff]
        %v320 = vld [vmem:[#allocation2 + $0x8] sm:$0xff]
        %s321 = sld [smem:[#allocation3]]
        %v322 = vstv %s321
        %v323 = vmul.f32 %v322, %v319
        %v324 = vmul.f32 %v322, %v320
        %v325 = vadd.f32 %v323, 0.0
        %v326 = vadd.f32 %v324, 0.0
        %327 = vrot.lane.b32.xlu0 %v319, 127
        %v328 = vpop.permute.xlu0 %327
        %329 = vrot.lane.b32.xlu0 %v320, 127
        %v330 = vpop.permute.xlu0 %329
        %s331 = sld [smem:[#allocation3 + $0x1]]
        %v332 = vstv %s331
        %v333 = vmul.f32 %v332, %v328
        %v334 = vmul.f32 %v332, %v330
        %v335 = vadd.f32 %v325, %v333
        %v336 = vadd.f32 %v326, %v334
        %337 = vrot.lane.b32.xlu0 %v328, 127
        %v338 = vpop.permute.xlu0 %337
        %339 = vrot.lane.b32.xlu0 %v330, 127
        %v340 = vpop.permute.xlu0 %339
        %s341 = sld [smem:[#allocation3 + $0x2]]
        %v342 = vstv %s341
        %v343 = vmul.f32 %v342, %v338
        %v344 = vmul.f32 %v342, %v340
        %v345 = vadd.f32 %v335, %v343
        %v346 = vadd.f32 %v336, %v344
        %347 = vrot.lane.b32.xlu0 %v338, 127
        %v348 = vpop.permute.xlu0 %347
        %349 = vrot.lane.b32.xlu0 %v340, 127
        %v350 = vpop.permute.xlu0 %349
        %s351 = sld [smem:[#allocation3 + $0x3]]
        %v352 = vstv %s351
        %v353 = vmul.f32 %v352, %v348
        %v354 = vmul.f32 %v352, %v350
        %v355 = vadd.f32 %v345, %v353
        %v356 = vadd.f32 %v346, %v354
        %357 = vrot.lane.b32.xlu0 %v348, 127
        %v358 = vpop.permute.xlu0 %357
        %359 = vrot.lane.b32.xlu0 %v350, 127
        %v360 = vpop.permute.xlu0 %359
        %s361 = sld [smem:[#allocation3 + $0x4]]
        %v362 = vstv %s361
        %v363 = vmul.f32 %v362, %v358
        %v364 = vmul.f32 %v362, %v360
        %v365 = vadd.f32 %v355, %v363
        %v366 = vadd.f32 %v356, %v364
        %367 = vrot.lane.b32.xlu0 %v358, 127
        %v368 = vpop.permute.xlu0 %367
        %369 = vrot.lane.b32.xlu0 %v360, 127
        %v370 = vpop.permute.xlu0 %369
        %s371 = sld [smem:[#allocation3 + $0x5]]
        %v372 = vstv %s371
        %v373 = vmul.f32 %v372, %v368
        %v374 = vmul.f32 %v372, %v370
        %v375 = vadd.f32 %v365, %v373
        %v376 = vadd.f32 %v366, %v374
        %377 = vrot.lane.b32.xlu0 %v368, 127
        %v378 = vpop.permute.xlu0 %377
        %379 = vrot.lane.b32.xlu0 %v370, 127
        %v380 = vpop.permute.xlu0 %379
        %s381 = sld [smem:[#allocation3 + $0x6]]
        %v382 = vstv %s381
        %v383 = vmul.f32 %v382, %v378
        %v384 = vmul.f32 %v382, %v380
        %v385 = vadd.f32 %v375, %v383
        %v386 = vadd.f32 %v376, %v384
        %v387 = vld [vmem:[#allocation2 + $0x1] sm:$0xff]
        %v388 = vld [vmem:[#allocation2 + $0x9] sm:$0xff]
        %s389 = sld [smem:[#allocation3 + $0x7]]
        %v390 = vstv %s389
        %v391 = vmul.f32 %v390, %v387
        %v392 = vmul.f32 %v390, %v388
        %v393 = vadd.f32 %v385, %v391
        %v394 = vadd.f32 %v386, %v392
        %395 = vrot.lane.b32.xlu0 %v387, 127
        %v396 = vpop.permute.xlu0 %395
        %397 = vrot.lane.b32.xlu0 %v388, 127
        %v398 = vpop.permute.xlu0 %397
        %s399 = sld [smem:[#allocation3 + $0x8]]
        %v400 = vstv %s399
        %v401 = vmul.f32 %v400, %v396
        %v402 = vmul.f32 %v400, %v398
        %v403 = vadd.f32 %v393, %v401
        %v404 = vadd.f32 %v394, %v402
        %405 = vrot.lane.b32.xlu0 %v396, 127
        %v406 = vpop.permute.xlu0 %405
        %407 = vrot.lane.b32.xlu0 %v398, 127
        %v408 = vpop.permute.xlu0 %407
        %s409 = sld [smem:[#allocation3 + $0x9]]
        %v410 = vstv %s409
        %v411 = vmul.f32 %v410, %v406
        %v412 = vmul.f32 %v410, %v408
        %v413 = vadd.f32 %v403, %v411
        %v414 = vadd.f32 %v404, %v412
        %415 = vrot.lane.b32.xlu0 %v406, 127
        %v416 = vpop.permute.xlu0 %415
        %417 = vrot.lane.b32.xlu0 %v408, 127
        %v418 = vpop.permute.xlu0 %417
        %s419 = sld [smem:[#allocation3 + $0xa]]
        %v420 = vstv %s419
        %v421 = vmul.f32 %v420, %v416
        %v422 = vmul.f32 %v420, %v418
        %v423 = vadd.f32 %v413, %v421
        %v424 = vadd.f32 %v414, %v422
        %425 = vrot.lane.b32.xlu0 %v416, 127
        %v426 = vpop.permute.xlu0 %425
        %427 = vrot.lane.b32.xlu0 %v418, 127
        %v428 = vpop.permute.xlu0 %427
        %s429 = sld [smem:[#allocation3 + $0xb]]
        %v430 = vstv %s429
        %v431 = vmul.f32 %v430, %v426
        %v432 = vmul.f32 %v430, %v428
        %v433 = vadd.f32 %v423, %v431
        %v434 = vadd.f32 %v424, %v432
        %435 = vrot.lane.b32.xlu0 %v426, 127
        %v436 = vpop.permute.xlu0 %435
        %437 = vrot.lane.b32.xlu0 %v428, 127
        %v438 = vpop.permute.xlu0 %437
        %s439 = sld [smem:[#allocation3 + $0xc]]
        %v440 = vstv %s439
        %v441 = vmul.f32 %v440, %v436
        %v442 = vmul.f32 %v440, %v438
        %v443 = vadd.f32 %v433, %v441
        %v444 = vadd.f32 %v434, %v442
        %445 = vrot.lane.b32.xlu0 %v436, 127
        %v446 = vpop.permute.xlu0 %445
        %447 = vrot.lane.b32.xlu0 %v438, 127
        %v448 = vpop.permute.xlu0 %447
        %s449 = sld [smem:[#allocation3 + $0xd]]
        %v450 = vstv %s449
        %v451 = vmul.f32 %v450, %v446
        %v452 = vmul.f32 %v450, %v448
        %v453 = vadd.f32 %v443, %v451
        %v454 = vadd.f32 %v444, %v452
        %v455 = vld [vmem:[#allocation2 + $0x2] sm:$0xff]
        %v456 = vld [vmem:[#allocation2 + $0xa] sm:$0xff]
        %s457 = sld [smem:[#allocation3 + $0xe]]
        %v458 = vstv %s457
        %v459 = vmul.f32 %v458, %v455
        %v460 = vmul.f32 %v458, %v456
        %v461 = vadd.f32 %v453, %v459
        %v462 = vadd.f32 %v454, %v460
        %463 = vrot.lane.b32.xlu0 %v455, 127
        %v464 = vpop.permute.xlu0 %463
        %465 = vrot.lane.b32.xlu0 %v456, 127
        %v466 = vpop.permute.xlu0 %465
        %s467 = sld [smem:[#allocation3 + $0xf]]
        %v468 = vstv %s467
        %v469 = vmul.f32 %v468, %v464
        %v470 = vmul.f32 %v468, %v466
        %v471 = vadd.f32 %v461, %v469
        %v472 = vadd.f32 %v462, %v470
        %473 = vrot.lane.b32.xlu0 %v464, 127
        %v474 = vpop.permute.xlu0 %473
        %475 = vrot.lane.b32.xlu0 %v466, 127
        %v476 = vpop.permute.xlu0 %475
        %s477 = sld [smem:[#allocation3 + $0x10]]
        %v478 = vstv %s477
        %v479 = vmul.f32 %v478, %v474
        %v480 = vmul.f32 %v478, %v476
        %v481 = vadd.f32 %v471, %v479
        %v482 = vadd.f32 %v472, %v480
        %483 = vrot.lane.b32.xlu0 %v474, 127
        %v484 = vpop.permute.xlu0 %483
        %485 = vrot.lane.b32.xlu0 %v476, 127
        %v486 = vpop.permute.xlu0 %485
        %s487 = sld [smem:[#allocation3 + $0x11]]
        %v488 = vstv %s487
        %v489 = vmul.f32 %v488, %v484
        %v490 = vmul.f32 %v488, %v486
        %v491 = vadd.f32 %v481, %v489
        %v492 = vadd.f32 %v482, %v490
        %493 = vrot.lane.b32.xlu0 %v484, 127
        %v494 = vpop.permute.xlu0 %493
        %495 = vrot.lane.b32.xlu0 %v486, 127
        %v496 = vpop.permute.xlu0 %495
        %s497 = sld [smem:[#allocation3 + $0x12]]
        %v498 = vstv %s497
        %v499 = vmul.f32 %v498, %v494
        %v500 = vmul.f32 %v498, %v496
        %v501 = vadd.f32 %v491, %v499
        %v502 = vadd.f32 %v492, %v500
        %503 = vrot.lane.b32.xlu0 %v494, 127
        %v504 = vpop.permute.xlu0 %503
        %505 = vrot.lane.b32.xlu0 %v496, 127
        %v506 = vpop.permute.xlu0 %505
        %s507 = sld [smem:[#allocation3 + $0x13]]
        %v508 = vstv %s507
        %v509 = vmul.f32 %v508, %v504
        %v510 = vmul.f32 %v508, %v506
        %v511 = vadd.f32 %v501, %v509
        %v512 = vadd.f32 %v502, %v510
        %513 = vrot.lane.b32.xlu0 %v504, 127
        %v514 = vpop.permute.xlu0 %513
        %515 = vrot.lane.b32.xlu0 %v506, 127
        %v516 = vpop.permute.xlu0 %515
        %s517 = sld [smem:[#allocation3 + $0x14]]
        %v518 = vstv %s517
        %v519 = vmul.f32 %v518, %v514
        %v520 = vmul.f32 %v518, %v516
        %v521 = vadd.f32 %v511, %v519
        %v522 = vadd.f32 %v512, %v520
        %v523 = vld [vmem:[#allocation2 + $0x3] sm:$0xff]
        %v524 = vld [vmem:[#allocation2 + $0xb] sm:$0xff]
        %s525 = sld [smem:[#allocation3 + $0x15]]
        %v526 = vstv %s525
        %v527 = vmul.f32 %v526, %v523
        %v528 = vmul.f32 %v526, %v524
        %v529 = vadd.f32 %v521, %v527
        %v530 = vadd.f32 %v522, %v528
        %531 = vrot.lane.b32.xlu0 %v523, 127
        %v532 = vpop.permute.xlu0 %531
        %533 = vrot.lane.b32.xlu0 %v524, 127
        %v534 = vpop.permute.xlu0 %533
        %s535 = sld [smem:[#allocation3 + $0x16]]
        %v536 = vstv %s535
        %v537 = vmul.f32 %v536, %v532
        %v538 = vmul.f32 %v536, %v534
        %v539 = vadd.f32 %v529, %v537
        %v540 = vadd.f32 %v530, %v538
        %541 = vrot.lane.b32.xlu0 %v532, 127
        %v542 = vpop.permute.xlu0 %541
        %543 = vrot.lane.b32.xlu0 %v534, 127
        %v544 = vpop.permute.xlu0 %543
        %s545 = sld [smem:[#allocation3 + $0x17]]
        %v546 = vstv %s545
        %v547 = vmul.f32 %v546, %v542
        %v548 = vmul.f32 %v546, %v544
        %v549 = vadd.f32 %v539, %v547
        %v550 = vadd.f32 %v540, %v548
        %551 = vrot.lane.b32.xlu0 %v542, 127
        %v552 = vpop.permute.xlu0 %551
        %553 = vrot.lane.b32.xlu0 %v544, 127
        %v554 = vpop.permute.xlu0 %553
        %s555 = sld [smem:[#allocation3 + $0x18]]
        %v556 = vstv %s555
        %v557 = vmul.f32 %v556, %v552
        %v558 = vmul.f32 %v556, %v554
        %v559 = vadd.f32 %v549, %v557
        %v560 = vadd.f32 %v550, %v558
        %561 = vrot.lane.b32.xlu0 %v552, 127
        %v562 = vpop.permute.xlu0 %561
        %563 = vrot.lane.b32.xlu0 %v554, 127
        %v564 = vpop.permute.xlu0 %563
        %s565 = sld [smem:[#allocation3 + $0x19]]
        %v566 = vstv %s565
        %v567 = vmul.f32 %v566, %v562
        %v568 = vmul.f32 %v566, %v564
        %v569 = vadd.f32 %v559, %v567
        %v570 = vadd.f32 %v560, %v568
        %571 = vrot.lane.b32.xlu0 %v562, 127
        %v572 = vpop.permute.xlu0 %571
        %573 = vrot.lane.b32.xlu0 %v564, 127
        %v574 = vpop.permute.xlu0 %573
        %s575 = sld [smem:[#allocation3 + $0x1a]]
        %v576 = vstv %s575
        %v577 = vmul.f32 %v576, %v572
        %v578 = vmul.f32 %v576, %v574
        %v579 = vadd.f32 %v569, %v577
        %v580 = vadd.f32 %v570, %v578
        %581 = vrot.lane.b32.xlu0 %v572, 127
        %v582 = vpop.permute.xlu0 %581
        %583 = vrot.lane.b32.xlu0 %v574, 127
        %v584 = vpop.permute.xlu0 %583
        %s585 = sld [smem:[#allocation3 + $0x1b]]
        %v586 = vstv %s585
        %v587 = vmul.f32 %v586, %v582
        %v588 = vmul.f32 %v586, %v584
        %v589 = vadd.f32 %v579, %v587
        %v590 = vadd.f32 %v580, %v588
        %v591 = vld [vmem:[#allocation2 + $0x4] sm:$0xff]
        %v592 = vld [vmem:[#allocation2 + $0xc] sm:$0xff]
        %s593 = sld [smem:[#allocation3 + $0x1c]]
        %v594 = vstv %s593
        %v595 = vmul.f32 %v594, %v591
        %v596 = vmul.f32 %v594, %v592
        %v597 = vadd.f32 %v589, %v595
        %v598 = vadd.f32 %v590, %v596
        %599 = vrot.lane.b32.xlu0 %v591, 127
        %v600 = vpop.permute.xlu0 %599
        %601 = vrot.lane.b32.xlu0 %v592, 127
        %v602 = vpop.permute.xlu0 %601
        %s603 = sld [smem:[#allocation3 + $0x1d]]
        %v604 = vstv %s603
        %v605 = vmul.f32 %v604, %v600
        %v606 = vmul.f32 %v604, %v602
        %v607 = vadd.f32 %v597, %v605
        %v608 = vadd.f32 %v598, %v606
        %609 = vrot.lane.b32.xlu0 %v600, 127
        %v610 = vpop.permute.xlu0 %609
        %611 = vrot.lane.b32.xlu0 %v602, 127
        %v612 = vpop.permute.xlu0 %611
        %s613 = sld [smem:[#allocation3 + $0x1e]]
        %v614 = vstv %s613
        %v615 = vmul.f32 %v614, %v610
        %v616 = vmul.f32 %v614, %v612
        %v617 = vadd.f32 %v607, %v615
        %v618 = vadd.f32 %v608, %v616
        %619 = vrot.lane.b32.xlu0 %v610, 127
        %v620 = vpop.permute.xlu0 %619
        %621 = vrot.lane.b32.xlu0 %v612, 127
        %v622 = vpop.permute.xlu0 %621
        %s623 = sld [smem:[#allocation3 + $0x1f]]
        %v624 = vstv %s623
        %v625 = vmul.f32 %v624, %v620
        %v626 = vmul.f32 %v624, %v622
        %v627 = vadd.f32 %v617, %v625
        %v628 = vadd.f32 %v618, %v626
        %629 = vrot.lane.b32.xlu0 %v620, 127
        %v630 = vpop.permute.xlu0 %629
        %631 = vrot.lane.b32.xlu0 %v622, 127
        %v632 = vpop.permute.xlu0 %631
        %s633 = sld [smem:[#allocation3 + $0x20]]
        %v634 = vstv %s633
        %v635 = vmul.f32 %v634, %v630
        %v636 = vmul.f32 %v634, %v632
        %v637 = vadd.f32 %v627, %v635
        %v638 = vadd.f32 %v628, %v636
        %639 = vrot.lane.b32.xlu0 %v630, 127
        %v640 = vpop.permute.xlu0 %639
        %641 = vrot.lane.b32.xlu0 %v632, 127
        %v642 = vpop.permute.xlu0 %641
        %s643 = sld [smem:[#allocation3 + $0x21]]
        %v644 = vstv %s643
        %v645 = vmul.f32 %v644, %v640
        %v646 = vmul.f32 %v644, %v642
        %v647 = vadd.f32 %v637, %v645
        %v648 = vadd.f32 %v638, %v646
        %649 = vrot.lane.b32.xlu0 %v640, 127
        %v650 = vpop.permute.xlu0 %649
        %651 = vrot.lane.b32.xlu0 %v642, 127
        %v652 = vpop.permute.xlu0 %651
        %s653 = sld [smem:[#allocation3 + $0x22]]
        %v654 = vstv %s653
        %v655 = vmul.f32 %v654, %v650
        %v656 = vmul.f32 %v654, %v652
        %v657 = vadd.f32 %v647, %v655
        %v658 = vadd.f32 %v648, %v656
        %v659 = vld [vmem:[#allocation2 + $0x5] sm:$0xff]
        %v660 = vld [vmem:[#allocation2 + $0xd] sm:$0xff]
        %s661 = sld [smem:[#allocation3 + $0x23]]
        %v662 = vstv %s661
        %v663 = vmul.f32 %v662, %v659
        %v664 = vmul.f32 %v662, %v660
        %v665 = vadd.f32 %v657, %v663
        %v666 = vadd.f32 %v658, %v664
        %667 = vrot.lane.b32.xlu0 %v659, 127
        %v668 = vpop.permute.xlu0 %667
        %669 = vrot.lane.b32.xlu0 %v660, 127
        %v670 = vpop.permute.xlu0 %669
        %s671 = sld [smem:[#allocation3 + $0x24]]
        %v672 = vstv %s671
        %v673 = vmul.f32 %v672, %v668
        %v674 = vmul.f32 %v672, %v670
        %v675 = vadd.f32 %v665, %v673
        %v676 = vadd.f32 %v666, %v674
        %677 = vrot.lane.b32.xlu0 %v668, 127
        %v678 = vpop.permute.xlu0 %677
        %679 = vrot.lane.b32.xlu0 %v670, 127
        %v680 = vpop.permute.xlu0 %679
        %s681 = sld [smem:[#allocation3 + $0x25]]
        %v682 = vstv %s681
        %v683 = vmul.f32 %v682, %v678
        %v684 = vmul.f32 %v682, %v680
        %v685 = vadd.f32 %v675, %v683
        %v686 = vadd.f32 %v676, %v684
        %687 = vrot.lane.b32.xlu0 %v678, 127
        %v688 = vpop.permute.xlu0 %687
        %689 = vrot.lane.b32.xlu0 %v680, 127
        %v690 = vpop.permute.xlu0 %689
        %s691 = sld [smem:[#allocation3 + $0x26]]
        %v692 = vstv %s691
        %v693 = vmul.f32 %v692, %v688
        %v694 = vmul.f32 %v692, %v690
        %v695 = vadd.f32 %v685, %v693
        %v696 = vadd.f32 %v686, %v694
        %697 = vrot.lane.b32.xlu0 %v688, 127
        %v698 = vpop.permute.xlu0 %697
        %699 = vrot.lane.b32.xlu0 %v690, 127
        %v700 = vpop.permute.xlu0 %699
        %s701 = sld [smem:[#allocation3 + $0x27]]
        %v702 = vstv %s701
        %v703 = vmul.f32 %v702, %v698
        %v704 = vmul.f32 %v702, %v700
        %v705 = vadd.f32 %v695, %v703
        %v706 = vadd.f32 %v696, %v704
        %707 = vrot.lane.b32.xlu0 %v698, 127
        %v708 = vpop.permute.xlu0 %707
        %709 = vrot.lane.b32.xlu0 %v700, 127
        %v710 = vpop.permute.xlu0 %709
        %s711 = sld [smem:[#allocation3 + $0x28]]
        %v712 = vstv %s711
        %v713 = vmul.f32 %v712, %v708
        %v714 = vmul.f32 %v712, %v710
        %v715 = vadd.f32 %v705, %v713
        %v716 = vadd.f32 %v706, %v714
        %717 = vrot.lane.b32.xlu0 %v708, 127
        %v718 = vpop.permute.xlu0 %717
        %719 = vrot.lane.b32.xlu0 %v710, 127
        %v720 = vpop.permute.xlu0 %719
        %s721 = sld [smem:[#allocation3 + $0x29]]
        %v722 = vstv %s721
        %v723 = vmul.f32 %v722, %v718
        %v724 = vmul.f32 %v722, %v720
        %v725 = vadd.f32 %v715, %v723
        %v726 = vadd.f32 %v716, %v724
        %v727 = vld [vmem:[#allocation2 + $0x6] sm:$0xff]
        %v728 = vld [vmem:[#allocation2 + $0xe] sm:$0xff]
        %s729 = sld [smem:[#allocation3 + $0x2a]]
        %v730 = vstv %s729
        %v731 = vmul.f32 %v730, %v727
        %v732 = vmul.f32 %v730, %v728
        %v733 = vadd.f32 %v725, %v731
        %v734 = vadd.f32 %v726, %v732
        %735 = vrot.lane.b32.xlu0 %v727, 127
        %v736 = vpop.permute.xlu0 %735
        %737 = vrot.lane.b32.xlu0 %v728, 127
        %v738 = vpop.permute.xlu0 %737
        %s739 = sld [smem:[#allocation3 + $0x2b]]
        %v740 = vstv %s739
        %v741 = vmul.f32 %v740, %v736
        %v742 = vmul.f32 %v740, %v738
        %v743 = vadd.f32 %v733, %v741
        %v744 = vadd.f32 %v734, %v742
        %745 = vrot.lane.b32.xlu0 %v736, 127
        %v746 = vpop.permute.xlu0 %745
        %747 = vrot.lane.b32.xlu0 %v738, 127
        %v748 = vpop.permute.xlu0 %747
        %s749 = sld [smem:[#allocation3 + $0x2c]]
        %v750 = vstv %s749
        %v751 = vmul.f32 %v750, %v746
        %v752 = vmul.f32 %v750, %v748
        %v753 = vadd.f32 %v743, %v751
        %v754 = vadd.f32 %v744, %v752
        %755 = vrot.lane.b32.xlu0 %v746, 127
        %v756 = vpop.permute.xlu0 %755
        %757 = vrot.lane.b32.xlu0 %v748, 127
        %v758 = vpop.permute.xlu0 %757
        %s759 = sld [smem:[#allocation3 + $0x2d]]
        %v760 = vstv %s759
        %v761 = vmul.f32 %v760, %v756
        %v762 = vmul.f32 %v760, %v758
        %v763 = vadd.f32 %v753, %v761
        %v764 = vadd.f32 %v754, %v762
        %765 = vrot.lane.b32.xlu0 %v756, 127
        %v766 = vpop.permute.xlu0 %765
        %767 = vrot.lane.b32.xlu0 %v758, 127
        %v768 = vpop.permute.xlu0 %767
        %s769 = sld [smem:[#allocation3 + $0x2e]]
        %v770 = vstv %s769
        %v771 = vmul.f32 %v770, %v766
        %v772 = vmul.f32 %v770, %v768
        %v773 = vadd.f32 %v763, %v771
        %v774 = vadd.f32 %v764, %v772
        %775 = vrot.lane.b32.xlu0 %v766, 127
        %v776 = vpop.permute.xlu0 %775
        %777 = vrot.lane.b32.xlu0 %v768, 127
        %v778 = vpop.permute.xlu0 %777
        %s779 = sld [smem:[#allocation3 + $0x2f]]
        %v780 = vstv %s779
        %v781 = vmul.f32 %v780, %v776
        %v782 = vmul.f32 %v780, %v778
        %v783 = vadd.f32 %v773, %v781
        %v784 = vadd.f32 %v774, %v782
        %785 = vrot.lane.b32.xlu0 %v776, 127
        %v786 = vpop.permute.xlu0 %785
        %787 = vrot.lane.b32.xlu0 %v778, 127
        %v788 = vpop.permute.xlu0 %787
        %s789 = sld [smem:[#allocation3 + $0x30]]
        %v790 = vstv %s789
        %v791 = vmul.f32 %v790, %v786
        %v792 = vmul.f32 %v790, %v788
        %v793 = vadd.f32 %v783, %v791
        %v794 = vadd.f32 %v784, %v792
        %v795 = vld [vmem:[%s316] sm:$0xff]
        %v796 = vld [vmem:[%s316 + $0x8] sm:$0xff]
        %s797 = sld [smem:[#allocation3 + $0x31]]
        %v798 = vstv %s797
        %v799 = vmul.f32 %v798, %v795
        %v800 = vmul.f32 %v798, %v796
        %v801 = vadd.f32 %v793, %v799
        %v802 = vadd.f32 %v794, %v800
        %803 = vrot.lane.b32.xlu0 %v795, 127
        %v804 = vpop.permute.xlu0 %803
        %805 = vrot.lane.b32.xlu0 %v796, 127
        %v806 = vpop.permute.xlu0 %805
        %s807 = sld [smem:[#allocation3 + $0x32]]
        %v808 = vstv %s807
        %v809 = vmul.f32 %v808, %v804
        %v810 = vmul.f32 %v808, %v806
        %v811 = vadd.f32 %v801, %v809
        %v812 = vadd.f32 %v802, %v810
        %813 = vrot.lane.b32.xlu0 %v804, 127
        %v814 = vpop.permute.xlu0 %813
        %815 = vrot.lane.b32.xlu0 %v806, 127
        %v816 = vpop.permute.xlu0 %815
        %s817 = sld [smem:[#allocation3 + $0x33]]
        %v818 = vstv %s817
        %v819 = vmul.f32 %v818, %v814
        %v820 = vmul.f32 %v818, %v816
        %v821 = vadd.f32 %v811, %v819
        %v822 = vadd.f32 %v812, %v820
        %823 = vrot.lane.b32.xlu0 %v814, 127
        %v824 = vpop.permute.xlu0 %823
        %825 = vrot.lane.b32.xlu0 %v816, 127
        %v826 = vpop.permute.xlu0 %825
        %s827 = sld [smem:[#allocation3 + $0x34]]
        %v828 = vstv %s827
        %v829 = vmul.f32 %v828, %v824
        %v830 = vmul.f32 %v828, %v826
        %v831 = vadd.f32 %v821, %v829
        %v832 = vadd.f32 %v822, %v830
        %833 = vrot.lane.b32.xlu0 %v824, 127
        %v834 = vpop.permute.xlu0 %833
        %835 = vrot.lane.b32.xlu0 %v826, 127
        %v836 = vpop.permute.xlu0 %835
        %s837 = sld [smem:[#allocation3 + $0x35]]
        %v838 = vstv %s837
        %v839 = vmul.f32 %v838, %v834
        %v840 = vmul.f32 %v838, %v836
        %v841 = vadd.f32 %v831, %v839
        %v842 = vadd.f32 %v832, %v840
        %843 = vrot.lane.b32.xlu0 %v834, 127
        %v844 = vpop.permute.xlu0 %843
        %845 = vrot.lane.b32.xlu0 %v836, 127
        %v846 = vpop.permute.xlu0 %845
        %s847 = sld [smem:[#allocation3 + $0x36]]
        %v848 = vstv %s847
        %v849 = vmul.f32 %v848, %v844
        %v850 = vmul.f32 %v848, %v846
        %v851 = vadd.f32 %v841, %v849
        %v852 = vadd.f32 %v842, %v850
        %853 = vrot.lane.b32.xlu0 %v844, 127
        %v854 = vpop.permute.xlu0 %853
        %855 = vrot.lane.b32.xlu0 %v846, 127
        %v856 = vpop.permute.xlu0 %855
        %s857 = sld [smem:[#allocation3 + $0x37]]
        %v858 = vstv %s857
        %v859 = vmul.f32 %v858, %v854
        %v860 = vmul.f32 %v858, %v856
        %v861 = vadd.f32 %v851, %v859
        %v862 = vadd.f32 %v852, %v860
        %v863 = vld [vmem:[%s316 + $0x1] sm:$0xff]
        %v864 = vld [vmem:[%s316 + $0x9] sm:$0xff]
        %s865 = sld [smem:[#allocation3 + $0x38]]
        %v866 = vstv %s865
        %v867 = vmul.f32 %v866, %v863
        %v868 = vmul.f32 %v866, %v864
        %v869 = vadd.f32 %v861, %v867
        %v870 = vadd.f32 %v862, %v868
        %871 = vrot.lane.b32.xlu0 %v863, 127
        %v872 = vpop.permute.xlu0 %871
        %873 = vrot.lane.b32.xlu0 %v864, 127
        %v874 = vpop.permute.xlu0 %873
        %s875 = sld [smem:[#allocation3 + $0x39]]
        %v876 = vstv %s875
        %v877 = vmul.f32 %v876, %v872
        %v878 = vmul.f32 %v876, %v874
        %v879 = vadd.f32 %v869, %v877
        %v880 = vadd.f32 %v870, %v878
        %881 = vrot.lane.b32.xlu0 %v872, 127
        %v882 = vpop.permute.xlu0 %881
        %883 = vrot.lane.b32.xlu0 %v874, 127
        %v884 = vpop.permute.xlu0 %883
        %s885 = sld [smem:[#allocation3 + $0x3a]]
        %v886 = vstv %s885
        %v887 = vmul.f32 %v886, %v882
        %v888 = vmul.f32 %v886, %v884
        %v889 = vadd.f32 %v879, %v887
        %v890 = vadd.f32 %v880, %v888
        %891 = vrot.lane.b32.xlu0 %v882, 127
        %v892 = vpop.permute.xlu0 %891
        %893 = vrot.lane.b32.xlu0 %v884, 127
        %v894 = vpop.permute.xlu0 %893
        %s895 = sld [smem:[#allocation3 + $0x3b]]
        %v896 = vstv %s895
        %v897 = vmul.f32 %v896, %v892
        %v898 = vmul.f32 %v896, %v894
        %v899 = vadd.f32 %v889, %v897
        %v900 = vadd.f32 %v890, %v898
        %901 = vrot.lane.b32.xlu0 %v892, 127
        %v902 = vpop.permute.xlu0 %901
        %903 = vrot.lane.b32.xlu0 %v894, 127
        %v904 = vpop.permute.xlu0 %903
        %s905 = sld [smem:[#allocation3 + $0x3c]]
        %v906 = vstv %s905
        %v907 = vmul.f32 %v906, %v902
        %v908 = vmul.f32 %v906, %v904
        %v909 = vadd.f32 %v899, %v907
        %v910 = vadd.f32 %v900, %v908
        %911 = vrot.lane.b32.xlu0 %v902, 127
        %v912 = vpop.permute.xlu0 %911
        %913 = vrot.lane.b32.xlu0 %v904, 127
        %v914 = vpop.permute.xlu0 %913
        %s915 = sld [smem:[#allocation3 + $0x3d]]
        %v916 = vstv %s915
        %v917 = vmul.f32 %v916, %v912
        %v918 = vmul.f32 %v916, %v914
        %v919 = vadd.f32 %v909, %v917
        %v920 = vadd.f32 %v910, %v918
        %921 = vrot.lane.b32.xlu0 %v912, 127
        %v922 = vpop.permute.xlu0 %921
        %923 = vrot.lane.b32.xlu0 %v914, 127
        %v924 = vpop.permute.xlu0 %923
        %s925 = sld [smem:[#allocation3 + $0x3e]]
        %v926 = vstv %s925
        %v927 = vmul.f32 %v926, %v922
        %v928 = vmul.f32 %v926, %v924
        %v929 = vadd.f32 %v919, %v927
        %v930 = vadd.f32 %v920, %v928
        %v931 = vld [vmem:[%s316 + $0x2] sm:$0xff]
        %v932 = vld [vmem:[%s316 + $0xa] sm:$0xff]
        %s933 = sld [smem:[#allocation3 + $0x3f]]
        %v934 = vstv %s933
        %v935 = vmul.f32 %v934, %v931
        %v936 = vmul.f32 %v934, %v932
        %v937 = vadd.f32 %v929, %v935
        %v938 = vadd.f32 %v930, %v936
        %939 = vrot.lane.b32.xlu0 %v931, 127
        %v940 = vpop.permute.xlu0 %939
        %941 = vrot.lane.b32.xlu0 %v932, 127
        %v942 = vpop.permute.xlu0 %941
        %s943 = sld [smem:[#allocation3 + $0x40]]
        %v944 = vstv %s943
        %v945 = vmul.f32 %v944, %v940
        %v946 = vmul.f32 %v944, %v942
        %v947 = vadd.f32 %v937, %v945
        %v948 = vadd.f32 %v938, %v946
        %949 = vrot.lane.b32.xlu0 %v940, 127
        %v950 = vpop.permute.xlu0 %949
        %951 = vrot.lane.b32.xlu0 %v942, 127
        %v952 = vpop.permute.xlu0 %951
        %s953 = sld [smem:[#allocation3 + $0x41]]
        %v954 = vstv %s953
        %v955 = vmul.f32 %v954, %v950
        %v956 = vmul.f32 %v954, %v952
        %v957 = vadd.f32 %v947, %v955
        %v958 = vadd.f32 %v948, %v956
        %959 = vrot.lane.b32.xlu0 %v950, 127
        %v960 = vpop.permute.xlu0 %959
        %961 = vrot.lane.b32.xlu0 %v952, 127
        %v962 = vpop.permute.xlu0 %961
        %s963 = sld [smem:[#allocation3 + $0x42]]
        %v964 = vstv %s963
        %v965 = vmul.f32 %v964, %v960
        %v966 = vmul.f32 %v964, %v962
        %v967 = vadd.f32 %v957, %v965
        %v968 = vadd.f32 %v958, %v966
        %969 = vrot.lane.b32.xlu0 %v960, 127
        %v970 = vpop.permute.xlu0 %969
        %971 = vrot.lane.b32.xlu0 %v962, 127
        %v972 = vpop.permute.xlu0 %971
        %s973 = sld [smem:[#allocation3 + $0x43]]
        %v974 = vstv %s973
        %v975 = vmul.f32 %v974, %v970
        %v976 = vmul.f32 %v974, %v972
        %v977 = vadd.f32 %v967, %v975
        %v978 = vadd.f32 %v968, %v976
        %979 = vrot.lane.b32.xlu0 %v970, 127
        %v980 = vpop.permute.xlu0 %979
        %981 = vrot.lane.b32.xlu0 %v972, 127
        %v982 = vpop.permute.xlu0 %981
        %s983 = sld [smem:[#allocation3 + $0x44]]
        %v984 = vstv %s983
        %v985 = vmul.f32 %v984, %v980
        %v986 = vmul.f32 %v984, %v982
        %v987 = vadd.f32 %v977, %v985
        %v988 = vadd.f32 %v978, %v986
        %989 = vrot.lane.b32.xlu0 %v980, 127
        %v990 = vpop.permute.xlu0 %989
        %991 = vrot.lane.b32.xlu0 %v982, 127
        %v992 = vpop.permute.xlu0 %991
        %s993 = sld [smem:[#allocation3 + $0x45]]
        %v994 = vstv %s993
        %v995 = vmul.f32 %v994, %v990
        %v996 = vmul.f32 %v994, %v992
        %v997 = vadd.f32 %v987, %v995
        %v998 = vadd.f32 %v988, %v996
        %v999 = vld [vmem:[%s316 + $0x3] sm:$0xff]
        %v1000 = vld [vmem:[%s316 + $0xb] sm:$0xff]
        %s1001 = sld [smem:[#allocation3 + $0x46]]
        %v1002 = vstv %s1001
        %v1003 = vmul.f32 %v1002, %v999
        %v1004 = vmul.f32 %v1002, %v1000
        %v1005 = vadd.f32 %v997, %v1003
        %v1006 = vadd.f32 %v998, %v1004
        %1007 = vrot.lane.b32.xlu0 %v999, 127
        %v1008 = vpop.permute.xlu0 %1007
        %1009 = vrot.lane.b32.xlu0 %v1000, 127
        %v1010 = vpop.permute.xlu0 %1009
        %s1011 = sld [smem:[#allocation3 + $0x47]]
        %v1012 = vstv %s1011
        %v1013 = vmul.f32 %v1012, %v1008
        %v1014 = vmul.f32 %v1012, %v1010
        %v1015 = vadd.f32 %v1005, %v1013
        %v1016 = vadd.f32 %v1006, %v1014
        %1017 = vrot.lane.b32.xlu0 %v1008, 127
        %v1018 = vpop.permute.xlu0 %1017
        %1019 = vrot.lane.b32.xlu0 %v1010, 127
        %v1020 = vpop.permute.xlu0 %1019
        %s1021 = sld [smem:[#allocation3 + $0x48]]
        %v1022 = vstv %s1021
        %v1023 = vmul.f32 %v1022, %v1018
        %v1024 = vmul.f32 %v1022, %v1020
        %v1025 = vadd.f32 %v1015, %v1023
        %v1026 = vadd.f32 %v1016, %v1024
        %1027 = vrot.lane.b32.xlu0 %v1018, 127
        %v1028 = vpop.permute.xlu0 %1027
        %1029 = vrot.lane.b32.xlu0 %v1020, 127
        %v1030 = vpop.permute.xlu0 %1029
        %s1031 = sld [smem:[#allocation3 + $0x49]]
        %v1032 = vstv %s1031
        %v1033 = vmul.f32 %v1032, %v1028
        %v1034 = vmul.f32 %v1032, %v1030
        %v1035 = vadd.f32 %v1025, %v1033
        %v1036 = vadd.f32 %v1026, %v1034
        %1037 = vrot.lane.b32.xlu0 %v1028, 127
        %v1038 = vpop.permute.xlu0 %1037
        %1039 = vrot.lane.b32.xlu0 %v1030, 127
        %v1040 = vpop.permute.xlu0 %1039
        %s1041 = sld [smem:[#allocation3 + $0x4a]]
        %v1042 = vstv %s1041
        %v1043 = vmul.f32 %v1042, %v1038
        %v1044 = vmul.f32 %v1042, %v1040
        %v1045 = vadd.f32 %v1035, %v1043
        %v1046 = vadd.f32 %v1036, %v1044
        %1047 = vrot.lane.b32.xlu0 %v1038, 127
        %v1048 = vpop.permute.xlu0 %1047
        %1049 = vrot.lane.b32.xlu0 %v1040, 127
        %v1050 = vpop.permute.xlu0 %1049
        %s1051 = sld [smem:[#allocation3 + $0x4b]]
        %v1052 = vstv %s1051
        %v1053 = vmul.f32 %v1052, %v1048
        %v1054 = vmul.f32 %v1052, %v1050
        %v1055 = vadd.f32 %v1045, %v1053
        %v1056 = vadd.f32 %v1046, %v1054
        %1057 = vrot.lane.b32.xlu0 %v1048, 127
        %v1058 = vpop.permute.xlu0 %1057
        %1059 = vrot.lane.b32.xlu0 %v1050, 127
        %v1060 = vpop.permute.xlu0 %1059
        %s1061 = sld [smem:[#allocation3 + $0x4c]]
        %v1062 = vstv %s1061
        %v1063 = vmul.f32 %v1062, %v1058
        %v1064 = vmul.f32 %v1062, %v1060
        %v1065 = vadd.f32 %v1055, %v1063
        %v1066 = vadd.f32 %v1056, %v1064
        %v1067 = vld [vmem:[%s316 + $0x4] sm:$0xff]
        %v1068 = vld [vmem:[%s316 + $0xc] sm:$0xff]
        %s1069 = sld [smem:[#allocation3 + $0x4d]]
        %v1070 = vstv %s1069
        %v1071 = vmul.f32 %v1070, %v1067
        %v1072 = vmul.f32 %v1070, %v1068
        %v1073 = vadd.f32 %v1065, %v1071
        %v1074 = vadd.f32 %v1066, %v1072
        %1075 = vrot.lane.b32.xlu0 %v1067, 127
        %v1076 = vpop.permute.xlu0 %1075
        %1077 = vrot.lane.b32.xlu0 %v1068, 127
        %v1078 = vpop.permute.xlu0 %1077
        %s1079 = sld [smem:[#allocation3 + $0x4e]]
        %v1080 = vstv %s1079
        %v1081 = vmul.f32 %v1080, %v1076
        %v1082 = vmul.f32 %v1080, %v1078
        %v1083 = vadd.f32 %v1073, %v1081
        %v1084 = vadd.f32 %v1074, %v1082
        %1085 = vrot.lane.b32.xlu0 %v1076, 127
        %v1086 = vpop.permute.xlu0 %1085
        %1087 = vrot.lane.b32.xlu0 %v1078, 127
        %v1088 = vpop.permute.xlu0 %1087
        %s1089 = sld [smem:[#allocation3 + $0x4f]]
        %v1090 = vstv %s1089
        %v1091 = vmul.f32 %v1090, %v1086
        %v1092 = vmul.f32 %v1090, %v1088
        %v1093 = vadd.f32 %v1083, %v1091
        %v1094 = vadd.f32 %v1084, %v1092
        %1095 = vrot.lane.b32.xlu0 %v1086, 127
        %v1096 = vpop.permute.xlu0 %1095
        %1097 = vrot.lane.b32.xlu0 %v1088, 127
        %v1098 = vpop.permute.xlu0 %1097
        %s1099 = sld [smem:[#allocation3 + $0x50]]
        %v1100 = vstv %s1099
        %v1101 = vmul.f32 %v1100, %v1096
        %v1102 = vmul.f32 %v1100, %v1098
        %v1103 = vadd.f32 %v1093, %v1101
        %v1104 = vadd.f32 %v1094, %v1102
        %1105 = vrot.lane.b32.xlu0 %v1096, 127
        %v1106 = vpop.permute.xlu0 %1105
        %1107 = vrot.lane.b32.xlu0 %v1098, 127
        %v1108 = vpop.permute.xlu0 %1107
        %s1109 = sld [smem:[#allocation3 + $0x51]]
        %v1110 = vstv %s1109
        %v1111 = vmul.f32 %v1110, %v1106
        %v1112 = vmul.f32 %v1110, %v1108
        %v1113 = vadd.f32 %v1103, %v1111
        %v1114 = vadd.f32 %v1104, %v1112
        %1115 = vrot.lane.b32.xlu0 %v1106, 127
        %v1116 = vpop.permute.xlu0 %1115
        %1117 = vrot.lane.b32.xlu0 %v1108, 127
        %v1118 = vpop.permute.xlu0 %1117
        %s1119 = sld [smem:[#allocation3 + $0x52]]
        %v1120 = vstv %s1119
        %v1121 = vmul.f32 %v1120, %v1116
        %v1122 = vmul.f32 %v1120, %v1118
        %v1123 = vadd.f32 %v1113, %v1121
        %v1124 = vadd.f32 %v1114, %v1122
        %1125 = vrot.lane.b32.xlu0 %v1116, 127
        %v1126 = vpop.permute.xlu0 %1125
        %1127 = vrot.lane.b32.xlu0 %v1118, 127
        %v1128 = vpop.permute.xlu0 %1127
        %s1129 = sld [smem:[#allocation3 + $0x53]]
        %v1130 = vstv %s1129
        %v1131 = vmul.f32 %v1130, %v1126
        %v1132 = vmul.f32 %v1130, %v1128
        %v1133 = vadd.f32 %v1123, %v1131
        %v1134 = vadd.f32 %v1124, %v1132
        %v1135 = vld [vmem:[%s316 + $0x5] sm:$0xff]
        %v1136 = vld [vmem:[%s316 + $0xd] sm:$0xff]
        %s1137 = sld [smem:[#allocation3 + $0x54]]
        %v1138 = vstv %s1137
        %v1139 = vmul.f32 %v1138, %v1135
        %v1140 = vmul.f32 %v1138, %v1136
        %v1141 = vadd.f32 %v1133, %v1139
        %v1142 = vadd.f32 %v1134, %v1140
        %1143 = vrot.lane.b32.xlu0 %v1135, 127
        %v1144 = vpop.permute.xlu0 %1143
        %1145 = vrot.lane.b32.xlu0 %v1136, 127
        %v1146 = vpop.permute.xlu0 %1145
        %s1147 = sld [smem:[#allocation3 + $0x55]]
        %v1148 = vstv %s1147
        %v1149 = vmul.f32 %v1148, %v1144
        %v1150 = vmul.f32 %v1148, %v1146
        %v1151 = vadd.f32 %v1141, %v1149
        %v1152 = vadd.f32 %v1142, %v1150
        %1153 = vrot.lane.b32.xlu0 %v1144, 127
        %v1154 = vpop.permute.xlu0 %1153
        %1155 = vrot.lane.b32.xlu0 %v1146, 127
        %v1156 = vpop.permute.xlu0 %1155
        %s1157 = sld [smem:[#allocation3 + $0x56]]
        %v1158 = vstv %s1157
        %v1159 = vmul.f32 %v1158, %v1154
        %v1160 = vmul.f32 %v1158, %v1156
        %v1161 = vadd.f32 %v1151, %v1159
        %v1162 = vadd.f32 %v1152, %v1160
        %1163 = vrot.lane.b32.xlu0 %v1154, 127
        %v1164 = vpop.permute.xlu0 %1163
        %1165 = vrot.lane.b32.xlu0 %v1156, 127
        %v1166 = vpop.permute.xlu0 %1165
        %s1167 = sld [smem:[#allocation3 + $0x57]]
        %v1168 = vstv %s1167
        %v1169 = vmul.f32 %v1168, %v1164
        %v1170 = vmul.f32 %v1168, %v1166
        %v1171 = vadd.f32 %v1161, %v1169
        %v1172 = vadd.f32 %v1162, %v1170
        %1173 = vrot.lane.b32.xlu0 %v1164, 127
        %v1174 = vpop.permute.xlu0 %1173
        %1175 = vrot.lane.b32.xlu0 %v1166, 127
        %v1176 = vpop.permute.xlu0 %1175
        %s1177 = sld [smem:[#allocation3 + $0x58]]
        %v1178 = vstv %s1177
        %v1179 = vmul.f32 %v1178, %v1174
        %v1180 = vmul.f32 %v1178, %v1176
        %v1181 = vadd.f32 %v1171, %v1179
        %v1182 = vadd.f32 %v1172, %v1180
        %1183 = vrot.lane.b32.xlu0 %v1174, 127
        %v1184 = vpop.permute.xlu0 %1183
        %1185 = vrot.lane.b32.xlu0 %v1176, 127
        %v1186 = vpop.permute.xlu0 %1185
        %s1187 = sld [smem:[#allocation3 + $0x59]]
        %v1188 = vstv %s1187
        %v1189 = vmul.f32 %v1188, %v1184
        %v1190 = vmul.f32 %v1188, %v1186
        %v1191 = vadd.f32 %v1181, %v1189
        %v1192 = vadd.f32 %v1182, %v1190
        %1193 = vrot.lane.b32.xlu0 %v1184, 127
        %v1194 = vpop.permute.xlu0 %1193
        %1195 = vrot.lane.b32.xlu0 %v1186, 127
        %v1196 = vpop.permute.xlu0 %1195
        %s1197 = sld [smem:[#allocation3 + $0x5a]]
        %v1198 = vstv %s1197
        %v1199 = vmul.f32 %v1198, %v1194
        %v1200 = vmul.f32 %v1198, %v1196
        %v1201 = vadd.f32 %v1191, %v1199
        %v1202 = vadd.f32 %v1192, %v1200
        %v1203 = vld [vmem:[%s316 + $0x6] sm:$0xff]
        %v1204 = vld [vmem:[%s316 + $0xe] sm:$0xff]
        %s1205 = sld [smem:[#allocation3 + $0x5b]]
        %v1206 = vstv %s1205
        %v1207 = vmul.f32 %v1206, %v1203
        %v1208 = vmul.f32 %v1206, %v1204
        %v1209 = vadd.f32 %v1201, %v1207
        %v1210 = vadd.f32 %v1202, %v1208
        %1211 = vrot.lane.b32.xlu0 %v1203, 127
        %v1212 = vpop.permute.xlu0 %1211
        %1213 = vrot.lane.b32.xlu0 %v1204, 127
        %v1214 = vpop.permute.xlu0 %1213
        %s1215 = sld [smem:[#allocation3 + $0x5c]]
        %v1216 = vstv %s1215
        %v1217 = vmul.f32 %v1216, %v1212
        %v1218 = vmul.f32 %v1216, %v1214
        %v1219 = vadd.f32 %v1209, %v1217
        %v1220 = vadd.f32 %v1210, %v1218
        %1221 = vrot.lane.b32.xlu0 %v1212, 127
        %v1222 = vpop.permute.xlu0 %1221
        %1223 = vrot.lane.b32.xlu0 %v1214, 127
        %v1224 = vpop.permute.xlu0 %1223
        %s1225 = sld [smem:[#allocation3 + $0x5d]]
        %v1226 = vstv %s1225
        %v1227 = vmul.f32 %v1226, %v1222
        %v1228 = vmul.f32 %v1226, %v1224
        %v1229 = vadd.f32 %v1219, %v1227
        %v1230 = vadd.f32 %v1220, %v1228
        %1231 = vrot.lane.b32.xlu0 %v1222, 127
        %v1232 = vpop.permute.xlu0 %1231
        %1233 = vrot.lane.b32.xlu0 %v1224, 127
        %v1234 = vpop.permute.xlu0 %1233
        %s1235 = sld [smem:[#allocation3 + $0x5e]]
        %v1236 = vstv %s1235
        %v1237 = vmul.f32 %v1236, %v1232
        %v1238 = vmul.f32 %v1236, %v1234
        %v1239 = vadd.f32 %v1229, %v1237
        %v1240 = vadd.f32 %v1230, %v1238
        %1241 = vrot.lane.b32.xlu0 %v1232, 127
        %v1242 = vpop.permute.xlu0 %1241
        %1243 = vrot.lane.b32.xlu0 %v1234, 127
        %v1244 = vpop.permute.xlu0 %1243
        %s1245 = sld [smem:[#allocation3 + $0x5f]]
        %v1246 = vstv %s1245
        %v1247 = vmul.f32 %v1246, %v1242
        %v1248 = vmul.f32 %v1246, %v1244
        %v1249 = vadd.f32 %v1239, %v1247
        %v1250 = vadd.f32 %v1240, %v1248
        %1251 = vrot.lane.b32.xlu0 %v1242, 127
        %v1252 = vpop.permute.xlu0 %1251
        %1253 = vrot.lane.b32.xlu0 %v1244, 127
        %v1254 = vpop.permute.xlu0 %1253
        %s1255 = sld [smem:[#allocation3 + $0x60]]
        %v1256 = vstv %s1255
        %v1257 = vmul.f32 %v1256, %v1252
        %v1258 = vmul.f32 %v1256, %v1254
        %v1259 = vadd.f32 %v1249, %v1257
        %v1260 = vadd.f32 %v1250, %v1258
        %1261 = vrot.lane.b32.xlu0 %v1252, 127
        %v1262 = vpop.permute.xlu0 %1261
        %1263 = vrot.lane.b32.xlu0 %v1254, 127
        %v1264 = vpop.permute.xlu0 %1263
        %s1265 = sld [smem:[#allocation3 + $0x61]]
        %v1266 = vstv %s1265
        %v1267 = vmul.f32 %v1266, %v1262
        %v1268 = vmul.f32 %v1266, %v1264
        %v1269 = vadd.f32 %v1259, %v1267
        %v1270 = vadd.f32 %v1260, %v1268
        %v1271 = vrot.slane %v1269, 4
        %vm1272 = vcmask 1047556
        %v1273 = vsel %vm1272, 0.0, %v1271
        %v1275 = vunpack.c.l.s4 1983009808
        %v1276 = vunpack.c.0.s8 %v1275
        %v1277 = vperm.slane %v1269, %v1276
        %v1279 = vunpack.c.l.s4 1983009808
        %v1280 = vunpack.c.0.s8 %v1279
        %v1281 = vperm.slane %v1273, %v1280
        %v1282 = vrot.slane %v1277, 4
        %v1283 = vsel %vm1272, 0.0, %v1282
        %v1285 = vunpack.c.l.s4 1934713408
        %v1286 = vunpack.c.0.s8 %v1285
        %v1287 = vperm.slane %v1277, %v1286
        %v1289 = vunpack.c.l.s4 1934713408
        %v1290 = vunpack.c.0.s8 %v1289
        %v1291 = vperm.slane %v1283, %v1290
        %v1292 = vrot.slane %v1281, 4
        %v1293 = vsel %vm1272, 0.0, %v1292
        %v1295 = vunpack.c.l.s4 1934713408
        %v1296 = vunpack.c.0.s8 %v1295
        %v1297 = vperm.slane %v1281, %v1296
        %v1299 = vunpack.c.l.s4 1934713408
        %v1300 = vunpack.c.0.s8 %v1299
        %v1301 = vperm.slane %v1293, %v1300
        %v1302 = vrot.slane %v1287, 4
        %v1303 = vsel %vm1272, 0.0, %v1302
        %v1304 = vrot.slane %v1291, 4
        %v1305 = vsel %vm1272, 0.0, %v1304
        %v1306 = vrot.slane %v1297, 4
        %v1307 = vsel %vm1272, 0.0, %v1306
        %v1308 = vrot.slane %v1301, 4
        %v1309 = vsel %vm1272, 0.0, %v1308
        %v1310 = vrot.slane %v1270, 4
        %v1311 = vsel %vm1272, 0.0, %v1310
        %v1313 = vunpack.c.l.s4 1983009808
        %v1314 = vunpack.c.0.s8 %v1313
        %v1315 = vperm.slane %v1270, %v1314
        %v1317 = vunpack.c.l.s4 1983009808
        %v1318 = vunpack.c.0.s8 %v1317
        %v1319 = vperm.slane %v1311, %v1318
        %v1320 = vrot.slane %v1315, 4
        %v1321 = vsel %vm1272, 0.0, %v1320
        %v1323 = vunpack.c.l.s4 1934713408
        %v1324 = vunpack.c.0.s8 %v1323
        %v1325 = vperm.slane %v1315, %v1324
        %v1327 = vunpack.c.l.s4 1934713408
        %v1328 = vunpack.c.0.s8 %v1327
        %v1329 = vperm.slane %v1321, %v1328
        %v1330 = vrot.slane %v1319, 4
        %v1331 = vsel %vm1272, 0.0, %v1330
        %v1333 = vunpack.c.l.s4 1934713408
        %v1334 = vunpack.c.0.s8 %v1333
        %v1335 = vperm.slane %v1319, %v1334
        %v1337 = vunpack.c.l.s4 1934713408
        %v1338 = vunpack.c.0.s8 %v1337
        %v1339 = vperm.slane %v1331, %v1338
        %v1340 = vrot.slane %v1325, 4
        %v1341 = vsel %vm1272, 0.0, %v1340
        %v1342 = vrot.slane %v1329, 4
        %v1343 = vsel %vm1272, 0.0, %v1342
        %v1344 = vrot.slane %v1335, 4
        %v1345 = vsel %vm1272, 0.0, %v1344
        %v1346 = vrot.slane %v1339, 4
        %v1347 = vsel %vm1272, 0.0, %v1346
        %1349 = vrot.lane.b32.xlu0 %v1303, 16
        %v1350 = vpop.permute.xlu0 %1349
        %1353 = vrot.lane.b32.xlu0 %v1291, 32
        %v1354 = vpop.permute.xlu0 %1353
        %1357 = vrot.lane.b32.xlu0 %v1305, 48
        %v1358 = vpop.permute.xlu0 %1357
        %1361 = vrot.lane.b32.xlu0 %v1297, 64
        %v1362 = vpop.permute.xlu0 %1361
        %1365 = vrot.lane.b32.xlu0 %v1307, 80
        %v1366 = vpop.permute.xlu0 %1365
        %1369 = vrot.lane.b32.xlu0 %v1301, 96
        %v1370 = vpop.permute.xlu0 %1369
        %1373 = vrot.lane.b32.xlu0 %v1309, 112
        %v1374 = vpop.permute.xlu0 %1373
        %1377 = vrot.lane.b32.xlu0 %v1341, 16
        %v1378 = vpop.permute.xlu0 %1377
        %1381 = vrot.lane.b32.xlu0 %v1329, 32
        %v1382 = vpop.permute.xlu0 %1381
        %1385 = vrot.lane.b32.xlu0 %v1343, 48
        %v1386 = vpop.permute.xlu0 %1385
        %1389 = vrot.lane.b32.xlu0 %v1335, 64
        %v1390 = vpop.permute.xlu0 %1389
        %1393 = vrot.lane.b32.xlu0 %v1345, 80
        %v1394 = vpop.permute.xlu0 %1393
        %1397 = vrot.lane.b32.xlu0 %v1339, 96
        %v1398 = vpop.permute.xlu0 %1397
        %1401 = vrot.lane.b32.xlu0 %v1347, 112
        %v1402 = vpop.permute.xlu0 %1401
        %vm1404 = vcmask 130048
        %v1405 = vsel %vm1404, %v1287, %v1350
        %vm1406 = vcmask 261120
        %v1407 = vsel %vm1406, %v1405, %v1354
        %vm1408 = vcmask 392192
        %v1409 = vsel %vm1408, %v1407, %v1358
        %vm1410 = vcmask 523264
        %v1411 = vsel %vm1410, %v1409, %v1362
        %vm1412 = vcmask 654336
        %v1413 = vsel %vm1412, %v1411, %v1366
        %vm1414 = vcmask 785408
        %v1415 = vsel %vm1414, %v1413, %v1370
        %vm1416 = vcmask 916480
        %v1417 = vsel %vm1416, %v1415, %v1374
        %v1418 = vsel %vm1404, %v1325, %v1378
        %v1419 = vsel %vm1406, %v1418, %v1382
        %v1420 = vsel %vm1408, %v1419, %v1386
        %v1421 = vsel %vm1410, %v1420, %v1390
        %v1422 = vsel %vm1412, %v1421, %v1394
        %v1423 = vsel %vm1414, %v1422, %v1398
        %v1424 = vsel %vm1416, %v1423, %v1402
        %v1425 = vxor.u32 %v1417, 2147483648
        %v1426 = vxor.u32 %v1424, 2147483648
        %v1427 = vmul.f32 %v1425, 1.442695
        %v1428 = vpow.pop %v1427
        %v1429 = vmul.f32 %v1426, 1.442695
        %v1430 = vpow.pop %v1429
        %v1431 = vadd.f32 %v1428, 1.0
        %v1432 = vadd.f32 %v1430, 1.0
        %v1433 = vrcp.pop %v1431
        %v1434 = vmul.f32 %v1431, %v1433
        %v1435 = vsub.f32 1.0, %v1434
        %v1436 = vmul.f32 %v1433, %v1435
        %v1437 = vadd.f32 %v1433, %v1436
        %vm1438 = vweird.f32 %v1431
        %vm1439 = vweird.f32 %v1433
        %vm1440 = vmor %vm1438, %vm1439
        %v1441 = vsel %vm1440, %v1433, %v1437
        %v1442 = vand.u32 2147483647, %v1431
        %vm1443 = vcmp.eq.f32.partialorder %v1442, 8.507059e+37
        %v1444 = vand.u32 %v1431, 2147483648
        %v1445 = vor.u32 1.1754944e-38, %v1444
        %v1446 = vsel %vm1443, %v1445, %v1441
        %v1447 = vmul.f32 1.0, %v1446
        %v1448 = vrcp.pop %v1432
        %v1449 = vmul.f32 %v1432, %v1448
        %v1450 = vsub.f32 1.0, %v1449
        %v1451 = vmul.f32 %v1448, %v1450
        %v1452 = vadd.f32 %v1448, %v1451
        %vm1453 = vweird.f32 %v1432
        %vm1454 = vweird.f32 %v1448
        %vm1455 = vmor %vm1453, %vm1454
        %v1456 = vsel %vm1455, %v1448, %v1452
        %v1457 = vand.u32 2147483647, %v1432
        %vm1458 = vcmp.eq.f32.partialorder %v1457, 8.507059e+37
        %v1459 = vand.u32 %v1432, 2147483648
        %v1460 = vor.u32 1.1754944e-38, %v1459
        %v1461 = vsel %vm1458, %v1460, %v1456
        %v1462 = vmul.f32 1.0, %v1461
        %v1465 = vrot.slane %v1462, 7
        %vm1466 = vcmask 1040384
        %v1467 = vsel %vm1466, %v1447, %v1465
        %v1469 = vlaneseq
        %vm1470 = vcmp.ge.s32.totalorder %v1469, 0
        %vm1471 = vcmp.lt.s32.totalorder %v1469, 256
        %vm1472 = vmand %vm1470, %vm1471
        %1473 = vst.msk [vmem:[%s175] sm:$0x3] %vm1472, %v1467
        %s1474 = sand.u32 %s75, 1
        %s1475 = scalar_lea.sflag [#allocation5], %s1474
        %s1476 = sand.u32 %s75, 1
        %s1477 = smul.addr %s1476, 2
        %s1478 = scalar_lea.vmem [#allocation8], %s1477
        // Predicated region
        $region37: #{tpu_custom_call.1} parent=27 // pred_check
          %p1479 = pneg %p85
        $region38: #{tpu_custom_call.1} parent=27 // pred_check_branch
          %1481 = sbr.rel (%p1479) target = $region40
        $region39: #{tpu_custom_call.1} parent=27 // pred_region
          %1483 = vsyncadd %s1475, 0
          %s1484 = smul.addr %s20, 2
          %s1485 = scalar_lea.hbm %s2, %s1484
          %s1487 = sshll.u32 %s1478, 4
          %s1488 = int_to_ptr.vmem [resolvable:$true] %s1487
          %s1489 = sshll.u32 %s1485, 4
          %s1490 = int_to_ptr.hbm [resolvable:$true] %s1489
          %1492 = dma.vmem_to_hbm [thread:$0]  %s1488, 32, %s1490, %s1475
        $region40: #{tpu_custom_call.1} parent=27 // pred_fallthru
          _
      $region28: #{tpu_custom_call.1} parent=5 // pred_fallthru
        _
      %p1493 = scmp.le.s32.totalorder 2, %s15
      // Predicated region
      $region41: #{tpu_custom_call.1} parent=5 // pred_check
        %p1494 = pneg %p1493
      $region42: #{tpu_custom_call.1} parent=5 // pred_check_branch
        %1496 = sbr.rel (%p1494) target = $region44
      $region43: #{tpu_custom_call.1} parent=5 // pred_region
        %s1497 = ssub.s32 %s15, 2
        // Predicated region
        $region45: #{tpu_custom_call.1} parent=43 // pred_check
          %p1498 = pneg %p91
        $region46: #{tpu_custom_call.1} parent=43 // pred_check_branch
          %1500 = sbr.rel (%p1498) target = $region48
        $region47: #{tpu_custom_call.1} parent=43 // pred_region
          %s1501 = sand.u32 %s76, 1
          %s1502 = scalar_lea.sflag [#allocation5], %s1501
          %s1503 = sand.u32 %s76, 1
          %s1504 = smul.addr %s1503, 2
          %s1505 = scalar_lea.vmem [#allocation8], %s1504
          %1507 = dma.done %s1502, 32
        $region48: #{tpu_custom_call.1} parent=43 // pred_fallthru
          _
      $region44: #{tpu_custom_call.1} parent=5 // pred_fallthru
        _
    $region6: #{tpu_custom_call.1} parent=1 // loop_footer
      %s19 = sadd.s32 1, %s15
    $region7: #{tpu_custom_call.1} parent=1 // loop_footer_branch
      %14 = sbr.rel target = $region3
    $region8: #{tpu_custom_call.1} parent=1 // loop_exit
      _
    %1508 = vsyncpa [#allocation4], 1
    %s1509 = scalar_lea.sflag [#allocation4], 1
    %1510 = vsyncpa %s1509, 1
    %1511 = vsyncpa [#allocation5], 1
    %s1512 = scalar_lea.sflag [#allocation5], 1
    %1513 = vsyncpa %s1512, 1
    %1514 = vsyncpa [#allocation6], 1
    %s1515 = scalar_lea.sflag [#allocation6], 1
    %1516 = vsyncpa %s1515, 1

</llo_original>
